<compile_context>
chip_gen: v7x
topology: tpu7x:2x2x1
jax: 0.10.0
libtpu: 0.0.40
codegen_flags: <defaults>
</compile_context>

<pallas_src>
import jax
import jax.numpy as jnp
from jax.experimental import pallas as pl
from jax.experimental.pallas import tpu as pltpu

LANE = 128  # TPU lane width; hidden/gate/output dims are padded to this.


def dqn_kernel(x_ref, w1_ref, b1_ref, wih_ref, whh_ref, blstm_ref,
               w2_ref, b2_ref,
               q_ref, hn_ref, cn_ref):
    """Whole DQN forward for one (seq, input_dim) sequence, VMEM-resident.

    All hidden-sized axes are pre-padded to HP (= 128) lanes by the wrapper,
    so the gate slices below are full-vreg lane blocks (no rotations).
    """
    seq = x_ref.shape[0]               # static sequence length
    HP = hn_ref.shape[1]               # lane-padded hidden size (128)

    # ---- fc1 + ReLU: (seq, in) @ (in, HP) + b1 ------------------------------
    h1 = jnp.maximum(
        jnp.dot(x_ref[...], w1_ref[...], preferred_element_type=jnp.float32)
        + b1_ref[...],
        0.0,
    )                                   # (seq, HP)

    # ---- hoisted LSTM input projection: one batched MXU matmul --------------
    gates_x = (jnp.dot(h1, wih_ref[...], preferred_element_type=jnp.float32)
               + blstm_ref[...])        # (seq, 4*HP)

    # ---- recurrence (batch = 1), fully unrolled; only h @ W_hh per step -----
    whh = whh_ref[...]                  # hoisted recurrent weight (HP, 4*HP)
    h = jnp.zeros((1, HP), jnp.float32)
    c = jnp.zeros((1, HP), jnp.float32)
    hs = []
    for t in range(seq):                # static trip count -> unrolled
        pre = gates_x[t:t + 1, :] + jnp.dot(
            h, whh, preferred_element_type=jnp.float32)      # (1, 4*HP)
        i = jax.nn.sigmoid(pre[:, 0 * HP:1 * HP])
        f = jax.nn.sigmoid(pre[:, 1 * HP:2 * HP])
        g = jnp.tanh(pre[:, 2 * HP:3 * HP])
        o = jax.nn.sigmoid(pre[:, 3 * HP:4 * HP])
        c = f * c + i * g
        h = o * jnp.tanh(c)
        hs.append(h)
    hn_ref[...] = h                     # (1, HP) lane-dense store
    cn_ref[...] = c

    # ---- fc2 on the bulk (seq, HP) LSTM output; lane-dense (seq, OP) store --
    lstm_out = jnp.concatenate(hs, axis=0)                   # (seq, HP)
    q_ref[...] = (jnp.dot(lstm_out, w2_ref[...],
                          preferred_element_type=jnp.float32)
                  + b2_ref[...])


def _pad_params(params, input_dim, H, out_dim):
    """Zero-pad all weights so every kernel axis is 128-lane aligned.

    Padding is exact: padded lanes carry zeros through the entire forward.
    """
    (w1, b1, wih, whh, b_ih, b_hh, w2, b2) = params
    f32 = jnp.float32
    HP = LANE
    OP = LANE

    w1_p = jnp.zeros((input_dim, HP), f32).at[:, :H].set(w1)
    b1_p = jnp.zeros((1, HP), f32).at[:, :H].set(b1)

    # LSTM weights: pad each of the 4 gate column blocks from H -> HP and the
    # hidden contraction rows from H -> HP (gate order [i, f, g, o]).
    wih_p = (jnp.zeros((HP, 4, HP), f32)
             .at[:H, :, :H].set(wih.reshape(H, 4, H))
             .reshape(HP, 4 * HP))
    whh_p = (jnp.zeros((HP, 4, HP), f32)
             .at[:H, :, :H].set(whh.reshape(H, 4, H))
             .reshape(HP, 4 * HP))
    b_lstm = (b_ih + b_hh).reshape(1, 4, H)
    blstm_p = (jnp.zeros((1, 4, HP), f32)
               .at[:, :, :H].set(b_lstm)
               .reshape(1, 4 * HP))

    w2_p = jnp.zeros((HP, OP), f32).at[:H, :out_dim].set(w2)
    b2_p = jnp.zeros((1, OP), f32).at[:, :out_dim].set(b2)
    return (w1_p, b1_p, wih_p, whh_p, blstm_p, w2_p, b2_p)


def dqn_forward(x, params):
    """Returns (q, (h_n, c_n)) matching the PyTorch module's forward."""
    (w1, b1, wih, whh, b_ih, b_hh, w2, b2) = params
    seq, input_dim = x.shape
    H = w1.shape[1]
    out_dim = w2.shape[1]
    HP = LANE
    OP = LANE

    padded = _pad_params(params, input_dim, H, out_dim)

    vmem = pl.BlockSpec(memory_space=pltpu.MemorySpace.VMEM)
    q_p, hn_p, cn_p = pl.pallas_call(
        dqn_kernel,
        out_shape=(
            jax.ShapeDtypeStruct((seq, OP), jnp.float32),
            jax.ShapeDtypeStruct((1, HP), jnp.float32),
            jax.ShapeDtypeStruct((1, HP), jnp.float32),
        ),
        in_specs=[vmem] * 8,
        out_specs=(vmem, vmem, vmem),
    )(x, *padded)

    # Slice the real columns back out of the lane-padded outputs.
    q = q_p[:, :out_dim]
    # PyTorch LSTM returns hidden as (num_layers=1, batch=1, H).
    h_n = hn_p[:, :H][None]
    c_n = cn_p[:, :H][None]
    return q, (h_n, c_n)


def dqn_reference(x, params):
    """Pure-JAX reference of the PyTorch forward, for validation."""
    (w1, b1, wih, whh, b_ih, b_hh, w2, b2) = params
    H = w1.shape[1]
    h1 = jnp.maximum(x @ w1 + b1, 0.0)
    h = jnp.zeros((1, H), jnp.float32)
    c = jnp.zeros((1, H), jnp.float32)
    outs = []
    for t in range(x.shape[0]):
        x_t = h1[t:t + 1]
        pre = x_t @ wih + h @ whh + (b_ih + b_hh)
        i = jax.nn.sigmoid(pre[:, 0:H])
        f = jax.nn.sigmoid(pre[:, H:2 * H])
        g = jnp.tanh(pre[:, 2 * H:3 * H])
        o = jax.nn.sigmoid(pre[:, 3 * H:4 * H])
        c = f * c + i * g
        h = o * jnp.tanh(c)
        outs.append(h)
    lstm_out = jnp.concatenate(outs, axis=0)
    q = lstm_out @ w2 + b2
    return q, (h[None], c[None])


def init_params(key, input_dim, hidden_dim, output_dim):
    """Deterministic init mirroring PyTorch default uniform ranges."""
    ks = jax.random.split(key, 8)
    s1 = 1.0 / jnp.sqrt(input_dim)
    sl = 1.0 / jnp.sqrt(hidden_dim)
    s2 = 1.0 / jnp.sqrt(hidden_dim)
    u = lambda k, shape, s: jax.random.uniform(k, shape, jnp.float32, -s, s)
    w1 = u(ks[0], (input_dim, hidden_dim), s1)            # fc1 weight^T
    b1 = u(ks[1], (hidden_dim,), s1)
    wih = u(ks[2], (hidden_dim, 4 * hidden_dim), sl)      # weight_ih_l0^T
    whh = u(ks[3], (hidden_dim, 4 * hidden_dim), sl)      # weight_hh_l0^T
    b_ih = u(ks[4], (4 * hidden_dim,), sl)
    b_hh = u(ks[5], (4 * hidden_dim,), sl)
    w2 = u(ks[6], (hidden_dim, output_dim), s2)           # fc2 weight^T
    b2 = u(ks[7], (output_dim,), s2)
    return (w1, b1, wih, whh, b_ih, b_hh, w2, b2)


if __name__ == "__main__":
    input_dim, hidden_dim, output_dim = 16, 32, 4
    seq = 8

    key = jax.random.PRNGKey(0)
    pkey, xkey = jax.random.split(key)
    params = init_params(pkey, input_dim, hidden_dim, output_dim)
    x = jax.random.normal(xkey, (seq, input_dim), jnp.float32)

    q, (h_n, c_n) = dqn_forward(x, params)
    jax.block_until_ready((q, h_n, c_n))

    q_ref, (h_ref, c_ref) = dqn_reference(x, params)
    assert jnp.allclose(q, q_ref, rtol=1e-3, atol=1e-3), "q mismatch"
    assert jnp.allclose(h_n, h_ref, rtol=1e-3, atol=1e-3), "h_n mismatch"
    assert jnp.allclose(c_n, c_ref, rtol=1e-3, atol=1e-3), "c_n mismatch"

    print("KERNEL_OK")
</pallas_src>

<mosaic_0001>
module attributes {stable_mosaic.version = 11 : i64} {
  func.func @dqn_kernel(%arg0: memref<8x16xf32, #tpu.memory_space<vmem>>, %arg1: memref<16x128xf32, #tpu.memory_space<vmem>>, %arg2: memref<1x128xf32, #tpu.memory_space<vmem>>, %arg3: memref<128x512xf32, #tpu.memory_space<vmem>>, %arg4: memref<128x512xf32, #tpu.memory_space<vmem>>, %arg5: memref<1x512xf32, #tpu.memory_space<vmem>>, %arg6: memref<128x128xf32, #tpu.memory_space<vmem>>, %arg7: memref<1x128xf32, #tpu.memory_space<vmem>>, %arg8: memref<8x128xf32, #tpu.memory_space<vmem>>, %arg9: memref<1x128xf32, #tpu.memory_space<vmem>>, %arg10: memref<1x128xf32, #tpu.memory_space<vmem>>) attributes {dimension_semantics = [], scalar_prefetch = 0 : i64, scratch_operands = 0 : i64, tpu.core_type = #tpu.core_type<tc>} {
    %c0 = arith.constant 0 : index
    %c0_0 = arith.constant 0 : index
    %0 = vector.load %arg0[%c0, %c0_0] : memref<8x16xf32, #tpu.memory_space<vmem>>, vector<8x16xf32>
    %c0_1 = arith.constant 0 : index
    %c0_2 = arith.constant 0 : index
    %1 = vector.load %arg1[%c0_1, %c0_2] : memref<16x128xf32, #tpu.memory_space<vmem>>, vector<16x128xf32>
    %cst = arith.constant dense<0.000000e+00> : vector<8x128xf32>
    %2 = tpu.matmul %0, %1, %cst {dimension_numbers = #tpu.dot_dimension_numbers<[1], [0], [0], [1], [0, 0, 1, 1], [], []>} : vector<8x16xf32>, vector<16x128xf32>, vector<8x128xf32> -> vector<8x128xf32>
    %c0_3 = arith.constant 0 : index
    %c0_4 = arith.constant 0 : index
    %3 = vector.load %arg2[%c0_3, %c0_4] : memref<1x128xf32, #tpu.memory_space<vmem>>, vector<1x128xf32>
    %4 = vector.broadcast %3 : vector<1x128xf32> to vector<8x128xf32>
    %5 = arith.addf %2, %4 : vector<8x128xf32>
    %cst_5 = arith.constant 0.000000e+00 : f32
    %6 = vector.broadcast %cst_5 : f32 to vector<8x128xf32>
    %7 = arith.maximumf %5, %6 : vector<8x128xf32>
    %c0_6 = arith.constant 0 : index
    %c0_7 = arith.constant 0 : index
    %8 = vector.load %arg3[%c0_6, %c0_7] : memref<128x512xf32, #tpu.memory_space<vmem>>, vector<128x512xf32>
    %cst_8 = arith.constant dense<0.000000e+00> : vector<8x512xf32>
    %9 = tpu.matmul %7, %8, %cst_8 {dimension_numbers = #tpu.dot_dimension_numbers<[1], [0], [0], [1], [0, 0, 1, 1], [], []>} : vector<8x128xf32>, vector<128x512xf32>, vector<8x512xf32> -> vector<8x512xf32>
    %c0_9 = arith.constant 0 : index
    %c0_10 = arith.constant 0 : index
    %10 = vector.load %arg5[%c0_9, %c0_10] : memref<1x512xf32, #tpu.memory_space<vmem>>, vector<1x512xf32>
    %11 = vector.broadcast %10 : vector<1x512xf32> to vector<8x512xf32>
    %12 = arith.addf %9, %11 : vector<8x512xf32>
    %c0_11 = arith.constant 0 : index
    %c0_12 = arith.constant 0 : index
    %13 = vector.load %arg4[%c0_11, %c0_12] : memref<128x512xf32, #tpu.memory_space<vmem>>, vector<128x512xf32>
    %cst_13 = arith.constant 0.000000e+00 : f32
    %14 = vector.broadcast %cst_13 : f32 to vector<1x128xf32>
    %cst_14 = arith.constant 0.000000e+00 : f32
    %15 = vector.broadcast %cst_14 : f32 to vector<1x128xf32>
    %16 = vector.extract_strided_slice %12 {offsets = [0, 0], sizes = [1, 512], strides = [1, 1]} : vector<8x512xf32> to vector<1x512xf32>
    %cst_15 = arith.constant dense<0.000000e+00> : vector<1x512xf32>
    %17 = tpu.matmul %14, %13, %cst_15 {dimension_numbers = #tpu.dot_dimension_numbers<[1], [0], [0], [1], [0, 0, 1, 1], [], []>} : vector<1x128xf32>, vector<128x512xf32>, vector<1x512xf32> -> vector<1x512xf32>
    %18 = arith.addf %16, %17 : vector<1x512xf32>
    %19 = vector.extract_strided_slice %18 {offsets = [0, 0], sizes = [1, 128], strides = [1, 1]} : vector<1x512xf32> to vector<1x128xf32>
    %20 = arith.negf %19 : vector<1x128xf32>
    %21 = math.exp %20 : vector<1x128xf32>
    %cst_16 = arith.constant 1.000000e+00 : f32
    %22 = vector.broadcast %cst_16 : f32 to vector<1x128xf32>
    %23 = arith.addf %22, %21 : vector<1x128xf32>
    %24 = arith.divf %22, %23 : vector<1x128xf32>
    %25 = vector.extract_strided_slice %18 {offsets = [0, 128], sizes = [1, 128], strides = [1, 1]} : vector<1x512xf32> to vector<1x128xf32>
    %26 = arith.negf %25 : vector<1x128xf32>
    %27 = math.exp %26 : vector<1x128xf32>
    %cst_17 = arith.constant 1.000000e+00 : f32
    %28 = vector.broadcast %cst_17 : f32 to vector<1x128xf32>
    %29 = arith.addf %28, %27 : vector<1x128xf32>
    %30 = arith.divf %28, %29 : vector<1x128xf32>
    %31 = vector.extract_strided_slice %18 {offsets = [0, 256], sizes = [1, 128], strides = [1, 1]} : vector<1x512xf32> to vector<1x128xf32>
    %32 = math.tanh %31 : vector<1x128xf32>
    %33 = vector.extract_strided_slice %18 {offsets = [0, 384], sizes = [1, 128], strides = [1, 1]} : vector<1x512xf32> to vector<1x128xf32>
    %34 = arith.negf %33 : vector<1x128xf32>
    %35 = math.exp %34 : vector<1x128xf32>
    %cst_18 = arith.constant 1.000000e+00 : f32
    %36 = vector.broadcast %cst_18 : f32 to vector<1x128xf32>
    %37 = arith.addf %36, %35 : vector<1x128xf32>
    %38 = arith.divf %36, %37 : vector<1x128xf32>
    %39 = arith.mulf %30, %15 : vector<1x128xf32>
    %40 = arith.mulf %24, %32 : vector<1x128xf32>
    %41 = arith.addf %39, %40 : vector<1x128xf32>
    %42 = math.tanh %41 : vector<1x128xf32>
    %43 = arith.mulf %38, %42 : vector<1x128xf32>
    %44 = vector.extract_strided_slice %12 {offsets = [1, 0], sizes = [1, 512], strides = [1, 1]} : vector<8x512xf32> to vector<1x512xf32>
    %cst_19 = arith.constant dense<0.000000e+00> : vector<1x512xf32>
    %45 = tpu.matmul %43, %13, %cst_19 {dimension_numbers = #tpu.dot_dimension_numbers<[1], [0], [0], [1], [0, 0, 1, 1], [], []>} : vector<1x128xf32>, vector<128x512xf32>, vector<1x512xf32> -> vector<1x512xf32>
    %46 = arith.addf %44, %45 : vector<1x512xf32>
    %47 = vector.extract_strided_slice %46 {offsets = [0, 0], sizes = [1, 128], strides = [1, 1]} : vector<1x512xf32> to vector<1x128xf32>
    %48 = arith.negf %47 : vector<1x128xf32>
    %49 = math.exp %48 : vector<1x128xf32>
    %cst_20 = arith.constant 1.000000e+00 : f32
    %50 = vector.broadcast %cst_20 : f32 to vector<1x128xf32>
    %51 = arith.addf %50, %49 : vector<1x128xf32>
    %52 = arith.divf %50, %51 : vector<1x128xf32>
    %53 = vector.extract_strided_slice %46 {offsets = [0, 128], sizes = [1, 128], strides = [1, 1]} : vector<1x512xf32> to vector<1x128xf32>
    %54 = arith.negf %53 : vector<1x128xf32>
    %55 = math.exp %54 : vector<1x128xf32>
    %cst_21 = arith.constant 1.000000e+00 : f32
    %56 = vector.broadcast %cst_21 : f32 to vector<1x128xf32>
    %57 = arith.addf %56, %55 : vector<1x128xf32>
    %58 = arith.divf %56, %57 : vector<1x128xf32>
    %59 = vector.extract_strided_slice %46 {offsets = [0, 256], sizes = [1, 128], strides = [1, 1]} : vector<1x512xf32> to vector<1x128xf32>
    %60 = math.tanh %59 : vector<1x128xf32>
    %61 = vector.extract_strided_slice %46 {offsets = [0, 384], sizes = [1, 128], strides = [1, 1]} : vector<1x512xf32> to vector<1x128xf32>
    %62 = arith.negf %61 : vector<1x128xf32>
    %63 = math.exp %62 : vector<1x128xf32>
    %cst_22 = arith.constant 1.000000e+00 : f32
    %64 = vector.broadcast %cst_22 : f32 to vector<1x128xf32>
    %65 = arith.addf %64, %63 : vector<1x128xf32>
    %66 = arith.divf %64, %65 : vector<1x128xf32>
    %67 = arith.mulf %58, %41 : vector<1x128xf32>
    %68 = arith.mulf %52, %60 : vector<1x128xf32>
    %69 = arith.addf %67, %68 : vector<1x128xf32>
    %70 = math.tanh %69 : vector<1x128xf32>
    %71 = arith.mulf %66, %70 : vector<1x128xf32>
    %72 = vector.extract_strided_slice %12 {offsets = [2, 0], sizes = [1, 512], strides = [1, 1]} : vector<8x512xf32> to vector<1x512xf32>
    %cst_23 = arith.constant dense<0.000000e+00> : vector<1x512xf32>
    %73 = tpu.matmul %71, %13, %cst_23 {dimension_numbers = #tpu.dot_dimension_numbers<[1], [0], [0], [1], [0, 0, 1, 1], [], []>} : vector<1x128xf32>, vector<128x512xf32>, vector<1x512xf32> -> vector<1x512xf32>
    %74 = arith.addf %72, %73 : vector<1x512xf32>
    %75 = vector.extract_strided_slice %74 {offsets = [0, 0], sizes = [1, 128], strides = [1, 1]} : vector<1x512xf32> to vector<1x128xf32>
    %76 = arith.negf %75 : vector<1x128xf32>
    %77 = math.exp %76 : vector<1x128xf32>
    %cst_24 = arith.constant 1.000000e+00 : f32
    %78 = vector.broadcast %cst_24 : f32 to vector<1x128xf32>
    %79 = arith.addf %78, %77 : vector<1x128xf32>
    %80 = arith.divf %78, %79 : vector<1x128xf32>
    %81 = vector.extract_strided_slice %74 {offsets = [0, 128], sizes = [1, 128], strides = [1, 1]} : vector<1x512xf32> to vector<1x128xf32>
    %82 = arith.negf %81 : vector<1x128xf32>
    %83 = math.exp %82 : vector<1x128xf32>
    %cst_25 = arith.constant 1.000000e+00 : f32
    %84 = vector.broadcast %cst_25 : f32 to vector<1x128xf32>
    %85 = arith.addf %84, %83 : vector<1x128xf32>
    %86 = arith.divf %84, %85 : vector<1x128xf32>
    %87 = vector.extract_strided_slice %74 {offsets = [0, 256], sizes = [1, 128], strides = [1, 1]} : vector<1x512xf32> to vector<1x128xf32>
    %88 = math.tanh %87 : vector<1x128xf32>
    %89 = vector.extract_strided_slice %74 {offsets = [0, 384], sizes = [1, 128], strides = [1, 1]} : vector<1x512xf32> to vector<1x128xf32>
    %90 = arith.negf %89 : vector<1x128xf32>
    %91 = math.exp %90 : vector<1x128xf32>
    %cst_26 = arith.constant 1.000000e+00 : f32
    %92 = vector.broadcast %cst_26 : f32 to vector<1x128xf32>
    %93 = arith.addf %92, %91 : vector<1x128xf32>
    %94 = arith.divf %92, %93 : vector<1x128xf32>
    %95 = arith.mulf %86, %69 : vector<1x128xf32>
    %96 = arith.mulf %80, %88 : vector<1x128xf32>
    %97 = arith.addf %95, %96 : vector<1x128xf32>
    %98 = math.tanh %97 : vector<1x128xf32>
    %99 = arith.mulf %94, %98 : vector<1x128xf32>
    %100 = vector.extract_strided_slice %12 {offsets = [3, 0], sizes = [1, 512], strides = [1, 1]} : vector<8x512xf32> to vector<1x512xf32>
    %cst_27 = arith.constant dense<0.000000e+00> : vector<1x512xf32>
    %101 = tpu.matmul %99, %13, %cst_27 {dimension_numbers = #tpu.dot_dimension_numbers<[1], [0], [0], [1], [0, 0, 1, 1], [], []>} : vector<1x128xf32>, vector<128x512xf32>, vector<1x512xf32> -> vector<1x512xf32>
    %102 = arith.addf %100, %101 : vector<1x512xf32>
    %103 = vector.extract_strided_slice %102 {offsets = [0, 0], sizes = [1, 128], strides = [1, 1]} : vector<1x512xf32> to vector<1x128xf32>
    %104 = arith.negf %103 : vector<1x128xf32>
    %105 = math.exp %104 : vector<1x128xf32>
    %cst_28 = arith.constant 1.000000e+00 : f32
    %106 = vector.broadcast %cst_28 : f32 to vector<1x128xf32>
    %107 = arith.addf %106, %105 : vector<1x128xf32>
    %108 = arith.divf %106, %107 : vector<1x128xf32>
    %109 = vector.extract_strided_slice %102 {offsets = [0, 128], sizes = [1, 128], strides = [1, 1]} : vector<1x512xf32> to vector<1x128xf32>
    %110 = arith.negf %109 : vector<1x128xf32>
    %111 = math.exp %110 : vector<1x128xf32>
    %cst_29 = arith.constant 1.000000e+00 : f32
    %112 = vector.broadcast %cst_29 : f32 to vector<1x128xf32>
    %113 = arith.addf %112, %111 : vector<1x128xf32>
    %114 = arith.divf %112, %113 : vector<1x128xf32>
    %115 = vector.extract_strided_slice %102 {offsets = [0, 256], sizes = [1, 128], strides = [1, 1]} : vector<1x512xf32> to vector<1x128xf32>
    %116 = math.tanh %115 : vector<1x128xf32>
    %117 = vector.extract_strided_slice %102 {offsets = [0, 384], sizes = [1, 128], strides = [1, 1]} : vector<1x512xf32> to vector<1x128xf32>
    %118 = arith.negf %117 : vector<1x128xf32>
    %119 = math.exp %118 : vector<1x128xf32>
    %cst_30 = arith.constant 1.000000e+00 : f32
    %120 = vector.broadcast %cst_30 : f32 to vector<1x128xf32>
    %121 = arith.addf %120, %119 : vector<1x128xf32>
    %122 = arith.divf %120, %121 : vector<1x128xf32>
    %123 = arith.mulf %114, %97 : vector<1x128xf32>
    %124 = arith.mulf %108, %116 : vector<1x128xf32>
    %125 = arith.addf %123, %124 : vector<1x128xf32>
    %126 = math.tanh %125 : vector<1x128xf32>
    %127 = arith.mulf %122, %126 : vector<1x128xf32>
    %128 = vector.extract_strided_slice %12 {offsets = [4, 0], sizes = [1, 512], strides = [1, 1]} : vector<8x512xf32> to vector<1x512xf32>
    %cst_31 = arith.constant dense<0.000000e+00> : vector<1x512xf32>
    %129 = tpu.matmul %127, %13, %cst_31 {dimension_numbers = #tpu.dot_dimension_numbers<[1], [0], [0], [1], [0, 0, 1, 1], [], []>} : vector<1x128xf32>, vector<128x512xf32>, vector<1x512xf32> -> vector<1x512xf32>
    %130 = arith.addf %128, %129 : vector<1x512xf32>
    %131 = vector.extract_strided_slice %130 {offsets = [0, 0], sizes = [1, 128], strides = [1, 1]} : vector<1x512xf32> to vector<1x128xf32>
    %132 = arith.negf %131 : vector<1x128xf32>
    %133 = math.exp %132 : vector<1x128xf32>
    %cst_32 = arith.constant 1.000000e+00 : f32
    %134 = vector.broadcast %cst_32 : f32 to vector<1x128xf32>
    %135 = arith.addf %134, %133 : vector<1x128xf32>
    %136 = arith.divf %134, %135 : vector<1x128xf32>
    %137 = vector.extract_strided_slice %130 {offsets = [0, 128], sizes = [1, 128], strides = [1, 1]} : vector<1x512xf32> to vector<1x128xf32>
    %138 = arith.negf %137 : vector<1x128xf32>
    %139 = math.exp %138 : vector<1x128xf32>
    %cst_33 = arith.constant 1.000000e+00 : f32
    %140 = vector.broadcast %cst_33 : f32 to vector<1x128xf32>
    %141 = arith.addf %140, %139 : vector<1x128xf32>
    %142 = arith.divf %140, %141 : vector<1x128xf32>
    %143 = vector.extract_strided_slice %130 {offsets = [0, 256], sizes = [1, 128], strides = [1, 1]} : vector<1x512xf32> to vector<1x128xf32>
    %144 = math.tanh %143 : vector<1x128xf32>
    %145 = vector.extract_strided_slice %130 {offsets = [0, 384], sizes = [1, 128], strides = [1, 1]} : vector<1x512xf32> to vector<1x128xf32>
    %146 = arith.negf %145 : vector<1x128xf32>
    %147 = math.exp %146 : vector<1x128xf32>
    %cst_34 = arith.constant 1.000000e+00 : f32
    %148 = vector.broadcast %cst_34 : f32 to vector<1x128xf32>
    %149 = arith.addf %148, %147 : vector<1x128xf32>
    %150 = arith.divf %148, %149 : vector<1x128xf32>
    %151 = arith.mulf %142, %125 : vector<1x128xf32>
    %152 = arith.mulf %136, %144 : vector<1x128xf32>
    %153 = arith.addf %151, %152 : vector<1x128xf32>
    %154 = math.tanh %153 : vector<1x128xf32>
    %155 = arith.mulf %150, %154 : vector<1x128xf32>
    %156 = vector.extract_strided_slice %12 {offsets = [5, 0], sizes = [1, 512], strides = [1, 1]} : vector<8x512xf32> to vector<1x512xf32>
    %cst_35 = arith.constant dense<0.000000e+00> : vector<1x512xf32>
    %157 = tpu.matmul %155, %13, %cst_35 {dimension_numbers = #tpu.dot_dimension_numbers<[1], [0], [0], [1], [0, 0, 1, 1], [], []>} : vector<1x128xf32>, vector<128x512xf32>, vector<1x512xf32> -> vector<1x512xf32>
    %158 = arith.addf %156, %157 : vector<1x512xf32>
    %159 = vector.extract_strided_slice %158 {offsets = [0, 0], sizes = [1, 128], strides = [1, 1]} : vector<1x512xf32> to vector<1x128xf32>
    %160 = arith.negf %159 : vector<1x128xf32>
    %161 = math.exp %160 : vector<1x128xf32>
    %cst_36 = arith.constant 1.000000e+00 : f32
    %162 = vector.broadcast %cst_36 : f32 to vector<1x128xf32>
    %163 = arith.addf %162, %161 : vector<1x128xf32>
    %164 = arith.divf %162, %163 : vector<1x128xf32>
    %165 = vector.extract_strided_slice %158 {offsets = [0, 128], sizes = [1, 128], strides = [1, 1]} : vector<1x512xf32> to vector<1x128xf32>
    %166 = arith.negf %165 : vector<1x128xf32>
    %167 = math.exp %166 : vector<1x128xf32>
    %cst_37 = arith.constant 1.000000e+00 : f32
    %168 = vector.broadcast %cst_37 : f32 to vector<1x128xf32>
    %169 = arith.addf %168, %167 : vector<1x128xf32>
    %170 = arith.divf %168, %169 : vector<1x128xf32>
    %171 = vector.extract_strided_slice %158 {offsets = [0, 256], sizes = [1, 128], strides = [1, 1]} : vector<1x512xf32> to vector<1x128xf32>
    %172 = math.tanh %171 : vector<1x128xf32>
    %173 = vector.extract_strided_slice %158 {offsets = [0, 384], sizes = [1, 128], strides = [1, 1]} : vector<1x512xf32> to vector<1x128xf32>
    %174 = arith.negf %173 : vector<1x128xf32>
    %175 = math.exp %174 : vector<1x128xf32>
    %cst_38 = arith.constant 1.000000e+00 : f32
    %176 = vector.broadcast %cst_38 : f32 to vector<1x128xf32>
    %177 = arith.addf %176, %175 : vector<1x128xf32>
    %178 = arith.divf %176, %177 : vector<1x128xf32>
    %179 = arith.mulf %170, %153 : vector<1x128xf32>
    %180 = arith.mulf %164, %172 : vector<1x128xf32>
    %181 = arith.addf %179, %180 : vector<1x128xf32>
    %182 = math.tanh %181 : vector<1x128xf32>
    %183 = arith.mulf %178, %182 : vector<1x128xf32>
    %184 = vector.extract_strided_slice %12 {offsets = [6, 0], sizes = [1, 512], strides = [1, 1]} : vector<8x512xf32> to vector<1x512xf32>
    %cst_39 = arith.constant dense<0.000000e+00> : vector<1x512xf32>
    %185 = tpu.matmul %183, %13, %cst_39 {dimension_numbers = #tpu.dot_dimension_numbers<[1], [0], [0], [1], [0, 0, 1, 1], [], []>} : vector<1x128xf32>, vector<128x512xf32>, vector<1x512xf32> -> vector<1x512xf32>
    %186 = arith.addf %184, %185 : vector<1x512xf32>
    %187 = vector.extract_strided_slice %186 {offsets = [0, 0], sizes = [1, 128], strides = [1, 1]} : vector<1x512xf32> to vector<1x128xf32>
    %188 = arith.negf %187 : vector<1x128xf32>
    %189 = math.exp %188 : vector<1x128xf32>
    %cst_40 = arith.constant 1.000000e+00 : f32
    %190 = vector.broadcast %cst_40 : f32 to vector<1x128xf32>
    %191 = arith.addf %190, %189 : vector<1x128xf32>
    %192 = arith.divf %190, %191 : vector<1x128xf32>
    %193 = vector.extract_strided_slice %186 {offsets = [0, 128], sizes = [1, 128], strides = [1, 1]} : vector<1x512xf32> to vector<1x128xf32>
    %194 = arith.negf %193 : vector<1x128xf32>
    %195 = math.exp %194 : vector<1x128xf32>
    %cst_41 = arith.constant 1.000000e+00 : f32
    %196 = vector.broadcast %cst_41 : f32 to vector<1x128xf32>
    %197 = arith.addf %196, %195 : vector<1x128xf32>
    %198 = arith.divf %196, %197 : vector<1x128xf32>
    %199 = vector.extract_strided_slice %186 {offsets = [0, 256], sizes = [1, 128], strides = [1, 1]} : vector<1x512xf32> to vector<1x128xf32>
    %200 = math.tanh %199 : vector<1x128xf32>
    %201 = vector.extract_strided_slice %186 {offsets = [0, 384], sizes = [1, 128], strides = [1, 1]} : vector<1x512xf32> to vector<1x128xf32>
    %202 = arith.negf %201 : vector<1x128xf32>
    %203 = math.exp %202 : vector<1x128xf32>
    %cst_42 = arith.constant 1.000000e+00 : f32
    %204 = vector.broadcast %cst_42 : f32 to vector<1x128xf32>
    %205 = arith.addf %204, %203 : vector<1x128xf32>
    %206 = arith.divf %204, %205 : vector<1x128xf32>
    %207 = arith.mulf %198, %181 : vector<1x128xf32>
    %208 = arith.mulf %192, %200 : vector<1x128xf32>
    %209 = arith.addf %207, %208 : vector<1x128xf32>
    %210 = math.tanh %209 : vector<1x128xf32>
    %211 = arith.mulf %206, %210 : vector<1x128xf32>
    %212 = vector.extract_strided_slice %12 {offsets = [7, 0], sizes = [1, 512], strides = [1, 1]} : vector<8x512xf32> to vector<1x512xf32>
    %cst_43 = arith.constant dense<0.000000e+00> : vector<1x512xf32>
    %213 = tpu.matmul %211, %13, %cst_43 {dimension_numbers = #tpu.dot_dimension_numbers<[1], [0], [0], [1], [0, 0, 1, 1], [], []>} : vector<1x128xf32>, vector<128x512xf32>, vector<1x512xf32> -> vector<1x512xf32>
    %214 = arith.addf %212, %213 : vector<1x512xf32>
    %215 = vector.extract_strided_slice %214 {offsets = [0, 0], sizes = [1, 128], strides = [1, 1]} : vector<1x512xf32> to vector<1x128xf32>
    %216 = arith.negf %215 : vector<1x128xf32>
    %217 = math.exp %216 : vector<1x128xf32>
    %cst_44 = arith.constant 1.000000e+00 : f32
    %218 = vector.broadcast %cst_44 : f32 to vector<1x128xf32>
    %219 = arith.addf %218, %217 : vector<1x128xf32>
    %220 = arith.divf %218, %219 : vector<1x128xf32>
    %221 = vector.extract_strided_slice %214 {offsets = [0, 128], sizes = [1, 128], strides = [1, 1]} : vector<1x512xf32> to vector<1x128xf32>
    %222 = arith.negf %221 : vector<1x128xf32>
    %223 = math.exp %222 : vector<1x128xf32>
    %cst_45 = arith.constant 1.000000e+00 : f32
    %224 = vector.broadcast %cst_45 : f32 to vector<1x128xf32>
    %225 = arith.addf %224, %223 : vector<1x128xf32>
    %226 = arith.divf %224, %225 : vector<1x128xf32>
    %227 = vector.extract_strided_slice %214 {offsets = [0, 256], sizes = [1, 128], strides = [1, 1]} : vector<1x512xf32> to vector<1x128xf32>
    %228 = math.tanh %227 : vector<1x128xf32>
    %229 = vector.extract_strided_slice %214 {offsets = [0, 384], sizes = [1, 128], strides = [1, 1]} : vector<1x512xf32> to vector<1x128xf32>
    %230 = arith.negf %229 : vector<1x128xf32>
    %231 = math.exp %230 : vector<1x128xf32>
    %cst_46 = arith.constant 1.000000e+00 : f32
    %232 = vector.broadcast %cst_46 : f32 to vector<1x128xf32>
    %233 = arith.addf %232, %231 : vector<1x128xf32>
    %234 = arith.divf %232, %233 : vector<1x128xf32>
    %235 = arith.mulf %226, %209 : vector<1x128xf32>
    %236 = arith.mulf %220, %228 : vector<1x128xf32>
    %237 = arith.addf %235, %236 : vector<1x128xf32>
    %238 = math.tanh %237 : vector<1x128xf32>
    %239 = arith.mulf %234, %238 : vector<1x128xf32>
    %c0_47 = arith.constant 0 : index
    %c0_48 = arith.constant 0 : index
    %240 = vector.load %arg9[%c0_47, %c0_48] : memref<1x128xf32, #tpu.memory_space<vmem>>, vector<1x128xf32>
    tpu.vector_store %arg9[%c0_47, %c0_48], %239 {strides = array<i32>} : memref<1x128xf32, #tpu.memory_space<vmem>>, vector<1x128xf32>,
    %c0_49 = arith.constant 0 : index
    %c0_50 = arith.constant 0 : index
    %241 = vector.load %arg10[%c0_49, %c0_50] : memref<1x128xf32, #tpu.memory_space<vmem>>, vector<1x128xf32>
    tpu.vector_store %arg10[%c0_49, %c0_50], %237 {strides = array<i32>} : memref<1x128xf32, #tpu.memory_space<vmem>>, vector<1x128xf32>,
    %242 = tpu.concatenate %43, %71, %99, %127, %155, %183, %211, %239 in 0 : vector<1x128xf32>, vector<1x128xf32>, vector<1x128xf32>, vector<1x128xf32>, vector<1x128xf32>, vector<1x128xf32>, vector<1x128xf32>, vector<1x128xf32> -> vector<8x128xf32>
    %c0_51 = arith.constant 0 : index
    %c0_52 = arith.constant 0 : index
    %243 = vector.load %arg6[%c0_51, %c0_52] : memref<128x128xf32, #tpu.memory_space<vmem>>, vector<128x128xf32>
    %cst_53 = arith.constant dense<0.000000e+00> : vector<8x128xf32>
    %244 = tpu.matmul %242, %243, %cst_53 {dimension_numbers = #tpu.dot_dimension_numbers<[1], [0], [0], [1], [0, 0, 1, 1], [], []>} : vector<8x128xf32>, vector<128x128xf32>, vector<8x128xf32> -> vector<8x128xf32>
    %c0_54 = arith.constant 0 : index
    %c0_55 = arith.constant 0 : index
    %245 = vector.load %arg7[%c0_54, %c0_55] : memref<1x128xf32, #tpu.memory_space<vmem>>, vector<1x128xf32>
    %246 = vector.broadcast %245 : vector<1x128xf32> to vector<8x128xf32>
    %247 = arith.addf %244, %246 : vector<8x128xf32>
    %c0_56 = arith.constant 0 : index
    %c0_57 = arith.constant 0 : index
    %248 = vector.load %arg8[%c0_56, %c0_57] : memref<8x128xf32, #tpu.memory_space<vmem>>, vector<8x128xf32>
    tpu.vector_store %arg8[%c0_56, %c0_57], %247 {strides = array<i32>} : memref<8x128xf32, #tpu.memory_space<vmem>>, vector<8x128xf32>,
    return
  }
}

</mosaic_0001>

<llo_original>
// kernel: tpu_custom_call.1
$region0: #{tpu_custom_call.1}
  #allocation0 [shape = 'u32[]', space=smem, size = 0x4, offset = 0x4, fixed_abs, tag = 'smem constant byte address 0x4 - core index']
  #allocation1 [shape = 'u32[144,128]{1,0:T(1,128)}', space=vmem, size = 0x12000, scoped, tag = 'internal scratch']
  %s0 = inlined_call_operand.hbm [shape: f32[8,16], index: 0, kind: input, shape index: {}]
  %s1 = inlined_call_operand.hbm [shape: f32[16,128], index: 1, kind: input, shape index: {}]
  %s2 = inlined_call_operand.vmem [shape: f32[1,128], index: 2, kind: input, shape index: {}]
  %s3 = inlined_call_operand.hbm [shape: f32[128,512], index: 3, kind: input, shape index: {}]
  %s4 = inlined_call_operand.hbm [shape: f32[128,512], index: 4, kind: input, shape index: {}]
  %s5 = inlined_call_operand.vmem [shape: f32[1,512], index: 5, kind: input, shape index: {}]
  %s6 = inlined_call_operand.hbm [shape: f32[128,128], index: 6, kind: input, shape index: {}]
  %s7 = inlined_call_operand.vmem [shape: f32[1,128], index: 7, kind: input, shape index: {}]
  %s8 = inlined_call_operand.hbm [shape: f32[8,128], index: 8, kind: output, shape index: {0}]
  %s9 = inlined_call_operand.hbm [shape: f32[1,128], index: 9, kind: output, shape index: {1}]
  %s10 = inlined_call_operand.hbm [shape: f32[1,128], index: 10, kind: output, shape index: {2}]
  %11 = xla_tuple %s8, %s9, %s10
  %s12 = sld [smem:[#allocation0]]
  $region78: #{tpu_custom_call.1} parent=0
    _
  %s14 = ssub.s32 1, %s12
  %s15 = scalar_select 0, %s14, %s12
  $region1: #{tpu_custom_call.1} parent=0
    #allocation2 [shape = 'u8[4096]{0}', space=vmem, size = 0x1000, scoped, tag = 'input window, operand 0, single buffered']
    #allocation3 [shape = 's32[1]{0}', space=sflag, size = 0x4, scoped, tag = 'scoped memory for tpu_custom_call.1']
    #allocation4 [shape = 's32[1]{0}', space=sflag, size = 0x4, scoped, tag = 'scoped memory for tpu_custom_call.1']
    #allocation5 [shape = 'u8[8192]{0}', space=vmem, size = 0x2000, scoped, tag = 'input window, operand 1, single buffered']
    #allocation6 [shape = 's32[1]{0}', space=sflag, size = 0x4, scoped, tag = 'scoped memory for tpu_custom_call.1']
    #allocation7 [shape = 'u8[262144]{0}', space=vmem, size = 0x40000, scoped, tag = 'input window, operand 3, single buffered']
    #allocation8 [shape = 'u8[262144]{0}', space=vmem, size = 0x40000, scoped, tag = 'input window, operand 4, single buffered']
    #allocation9 [shape = 's32[1]{0}', space=sflag, size = 0x4, scoped, tag = 'scoped memory for tpu_custom_call.1']
    #allocation10 [shape = 'u8[65536]{0}', space=vmem, size = 0x10000, scoped, tag = 'input window, operand 6, single buffered']
    #allocation11 [shape = 'u8[4096]{0}', space=vmem, size = 0x1000, scoped, tag = 'output window, operand 0, single buffered']
    #allocation12 [shape = 'u8[512]{0}', space=vmem, size = 0x400, scoped, tag = 'output window, operand 1, single buffered']
    #allocation13 [shape = 's32[1]{0}', space=sflag, size = 0x4, scoped, tag = 'scoped memory for tpu_custom_call.1']
    #allocation14 [shape = 'u8[512]{0}', space=vmem, size = 0x400, scoped, tag = 'output window, operand 2, single buffered']
    %16 = vsyncpa [#allocation3], 0
    %17 = vsyncpa [#allocation6], 0
    %18 = vsyncpa [#allocation9], 0
    %19 = vsyncpa [#allocation4], 0
    %20 = vsyncpa [#allocation13], 0
    // Predicated region
    $region2: #{tpu_custom_call.1} parent=1 // pred_check
      _
    $region3: #{tpu_custom_call.1} parent=1 // pred_check_branch
      %22 = sbr.rel (0) target = $region5
    $region4: #{tpu_custom_call.1} parent=1 // pred_region
      %s24 = ssub.s32 128, 128
      %25 = vsyncadd [#allocation3], %s24
      %s27 = sshll.u32 [#allocation2], 4
      %s28 = int_to_ptr.vmem [resolvable:$true] %s27
      %30 = dma.hbm_to_vmem [thread:$0]  %s0, 128, %s28, [#allocation3]
    $region5: #{tpu_custom_call.1} parent=1 // pred_fallthru
      _
    // Predicated region
    $region6: #{tpu_custom_call.1} parent=1 // pred_check
      _
    $region7: #{tpu_custom_call.1} parent=1 // pred_check_branch
      %32 = sbr.rel (0) target = $region9
    $region8: #{tpu_custom_call.1} parent=1 // pred_region
      %s34 = ssub.s32 256, 256
      %35 = vsyncadd [#allocation6], %s34
      %s36 = sshll.u32 [#allocation5], 4
      %s37 = int_to_ptr.vmem [resolvable:$true] %s36
      %42 = dma.hbm_to_vmem [thread:$0]  %s1, 256, %s37, [#allocation6], 128, 128, 8
    $region9: #{tpu_custom_call.1} parent=1 // pred_fallthru
      _
    // Predicated region
    $region10: #{tpu_custom_call.1} parent=1 // pred_check
      _
    $region11: #{tpu_custom_call.1} parent=1 // pred_check_branch
      %44 = sbr.rel (0) target = $region13
    $region12: #{tpu_custom_call.1} parent=1 // pred_region
      _
    $region13: #{tpu_custom_call.1} parent=1 // pred_fallthru
      _
    // Predicated region
    $region14: #{tpu_custom_call.1} parent=1 // pred_check
      _
    $region15: #{tpu_custom_call.1} parent=1 // pred_check_branch
      %46 = sbr.rel (0) target = $region17
    $region16: #{tpu_custom_call.1} parent=1 // pred_region
      %s48 = ssub.s32 8192, 8192
      %49 = vsyncadd [#allocation6], %s48
      %s50 = sshll.u32 [#allocation7], 4
      %s51 = int_to_ptr.vmem [resolvable:$true] %s50
      %56 = dma.hbm_to_vmem [thread:$0]  %s3, 8192, %s51, [#allocation6], 512, 512, 32
    $region17: #{tpu_custom_call.1} parent=1 // pred_fallthru
      _
    // Predicated region
    $region18: #{tpu_custom_call.1} parent=1 // pred_check
      _
    $region19: #{tpu_custom_call.1} parent=1 // pred_check_branch
      %58 = sbr.rel (0) target = $region21
    $region20: #{tpu_custom_call.1} parent=1 // pred_region
      %s60 = ssub.s32 8192, 8192
      %61 = vsyncadd [#allocation9], %s60
      %s62 = sshll.u32 [#allocation8], 4
      %s63 = int_to_ptr.vmem [resolvable:$true] %s62
      %68 = dma.hbm_to_vmem [thread:$0]  %s4, 8192, %s63, [#allocation9], 512, 512, 32
    $region21: #{tpu_custom_call.1} parent=1 // pred_fallthru
      _
    // Predicated region
    $region22: #{tpu_custom_call.1} parent=1 // pred_check
      _
    $region23: #{tpu_custom_call.1} parent=1 // pred_check_branch
      %70 = sbr.rel (0) target = $region25
    $region24: #{tpu_custom_call.1} parent=1 // pred_region
      _
    $region25: #{tpu_custom_call.1} parent=1 // pred_fallthru
      _
    // Predicated region
    $region26: #{tpu_custom_call.1} parent=1 // pred_check
      _
    $region27: #{tpu_custom_call.1} parent=1 // pred_check_branch
      %72 = sbr.rel (0) target = $region29
    $region28: #{tpu_custom_call.1} parent=1 // pred_region
      %s74 = ssub.s32 2048, 2048
      %75 = vsyncadd [#allocation9], %s74
      %s76 = sshll.u32 [#allocation10], 4
      %s77 = int_to_ptr.vmem [resolvable:$true] %s76
      %82 = dma.hbm_to_vmem [thread:$0]  %s6, 2048, %s77, [#allocation9], 128, 128, 8
    $region29: #{tpu_custom_call.1} parent=1 // pred_fallthru
      _
    // Predicated region
    $region30: #{tpu_custom_call.1} parent=1 // pred_check
      _
    $region31: #{tpu_custom_call.1} parent=1 // pred_check_branch
      %84 = sbr.rel (0) target = $region33
    $region32: #{tpu_custom_call.1} parent=1 // pred_region
      _
    $region33: #{tpu_custom_call.1} parent=1 // pred_fallthru
      _
    // Predicated region
    $region34: #{tpu_custom_call.1} parent=1 // pred_check
      _
    $region35: #{tpu_custom_call.1} parent=1 // pred_check_branch
      %86 = sbr.rel (0) target = $region37
    $region36: #{tpu_custom_call.1} parent=1 // pred_region
      %87 = dma.done [#allocation3], 128
    $region37: #{tpu_custom_call.1} parent=1 // pred_fallthru
      _
    // Predicated region
    $region38: #{tpu_custom_call.1} parent=1 // pred_check
      _
    $region39: #{tpu_custom_call.1} parent=1 // pred_check_branch
      %89 = sbr.rel (0) target = $region41
    $region40: #{tpu_custom_call.1} parent=1 // pred_region
      %90 = dma.done [#allocation6], 256
    $region41: #{tpu_custom_call.1} parent=1 // pred_fallthru
      _
    // Predicated region
    $region42: #{tpu_custom_call.1} parent=1 // pred_check
      _
    $region43: #{tpu_custom_call.1} parent=1 // pred_check_branch
      %92 = sbr.rel (0) target = $region45
    $region44: #{tpu_custom_call.1} parent=1 // pred_region
      %93 = dma.done [#allocation6], 8192
    $region45: #{tpu_custom_call.1} parent=1 // pred_fallthru
      _
    // Predicated region
    $region46: #{tpu_custom_call.1} parent=1 // pred_check
      _
    $region47: #{tpu_custom_call.1} parent=1 // pred_check_branch
      %95 = sbr.rel (0) target = $region49
    $region48: #{tpu_custom_call.1} parent=1 // pred_region
      %96 = dma.done [#allocation9], 8192
    $region49: #{tpu_custom_call.1} parent=1 // pred_fallthru
      _
    // Predicated region
    $region50: #{tpu_custom_call.1} parent=1 // pred_check
      _
    $region51: #{tpu_custom_call.1} parent=1 // pred_check_branch
      %98 = sbr.rel (0) target = $region53
    $region52: #{tpu_custom_call.1} parent=1 // pred_region
      %99 = dma.done [#allocation9], 2048
    $region53: #{tpu_custom_call.1} parent=1 // pred_fallthru
      _
    %v100 = vld [vmem:[#allocation2] sm:$0xff]
    %v101 = vld [vmem:[#allocation5] sm:$0xff]
    %v102 = vld [vmem:[#allocation5 + $0x8] sm:$0xff]
    %v103 = vld [vmem:[%s2] sm:$0x1]
    %v105 = vlaneseq
    %v106 = vshrl.u32 %v105, 7
    %v107 = vsub.s32 0, %v106
    %v108 = vrot.slane %v103, %v107
    %vm110 = vcmask 130048
    %v112 = vsel %vm110, %v100, 0
    %114 = vmatprep.subr.mxu0 0.0
    %115 = vmatpush1.msra.mxu0 %v101
    %116 = vmatprep.subr.mxu0 0.0
    %117 = vmatpush1.msra.mxu0 %v102
    %118 = vmatprep.subr.mxu0 0.0
    %119 = vmatpush1.msra.mxu0 0.0
    %120 = vmatprep.subr.mxu0 0.0
    %121 = vmatpush1.msra.mxu0 0.0
    %122 = vmatprep.subr.mxu0 0.0
    %123 = vmatpush1.msra.mxu0 0.0
    %124 = vmatprep.subr.mxu0 0.0
    %125 = vmatpush1.msra.mxu0 0.0
    %126 = vmatprep.subr.mxu0 0.0
    %127 = vmatpush1.msra.mxu0 0.0
    %128 = vmatprep.subr.mxu0 0.0
    %129 = vmatpush1.msra.mxu0 0.0
    %130 = vmatprep.subr.mxu0 0.0
    %131 = vmatpush1.msra.mxu0 0.0
    %132 = vmatprep.subr.mxu0 0.0
    %133 = vmatpush1.msra.mxu0 0.0
    %134 = vmatprep.subr.mxu0 0.0
    %135 = vmatpush1.msra.mxu0 0.0
    %136 = vmatprep.subr.mxu0 0.0
    %137 = vmatpush1.msra.mxu0 0.0
    %138 = vmatprep.subr.mxu0 0.0
    %139 = vmatpush1.msra.mxu0 0.0
    %140 = vmatprep.subr.mxu0 0.0
    %141 = vmatpush1.msra.mxu0 0.0
    %142 = vmatprep.subr.mxu0 0.0
    %143 = vmatpush1.msra.mxu0 0.0
    %144 = vmatprep.subr.mxu0 0.0
    %145 = vmatpush1.msra.mxu0 0.0
    %146 = vmatprep.subr.mxu0 0.0
    %147 = vmatpush1.msra.mxu0 0.0
    %148 = vmatprep.subr.mxu0 0.0
    %149 = vmatpush1.msra.mxu0 0.0
    %150 = vmatprep.subr.mxu0 0.0
    %151 = vmatpush1.msra.mxu0 0.0
    %152 = vmatprep.subr.mxu0 0.0
    %153 = vmatpush1.msra.mxu0 0.0
    %154 = vmatprep.subr.mxu0 0.0
    %155 = vmatpush1.msra.mxu0 0.0
    %156 = vmatprep.subr.mxu0 0.0
    %157 = vmatpush1.msra.mxu0 0.0
    %158 = vmatprep.subr.mxu0 0.0
    %159 = vmatpush1.msra.mxu0 0.0
    %160 = vmatprep.subr.mxu0 0.0
    %161 = vmatpush1.msra.mxu0 0.0
    %162 = vmatprep.subr.mxu0 0.0
    %163 = vmatpush1.msra.mxu0 0.0
    %164 = vmatprep.subr.mxu0 0.0
    %165 = vmatpush1.msra.mxu0 0.0
    %166 = vmatprep.subr.mxu0 0.0
    %167 = vmatpush1.msra.mxu0 0.0
    %168 = vmatprep.subr.mxu0 0.0
    %169 = vmatpush1.msra.mxu0 0.0
    %170 = vmatprep.subr.mxu0 0.0
    %171 = vmatpush1.msra.mxu0 0.0
    %172 = vmatprep.subr.mxu0 0.0
    %173 = vmatpush1.msra.mxu0 0.0
    %174 = vmatprep.subr.mxu0 0.0
    %175 = vmatpush1.msra.mxu0 0.0
    %176 = vmatprep.subr.mxu0 0.0
    %177 = vmatpush1.msra.mxu0 0.0
    %178 = vmatprep.mubr.f32.mxu0 0.0
    %179 = vmatmul.mubr.f32.gmra.mrb[0].mxu0 %v112
    %v180 = vpop.f32.mrb[0].mxu0
    %v181 = vadd.f32 %v108, %v180
    %v182 = vpop.f32.mrb[0].mxu0
    %183 = vdwg.mxu0
    %v184 = vmax.f32 %v181, 0.0
    %v185 = vld [vmem:[#allocation7] sm:$0xff]
    %v186 = vld [vmem:[#allocation7 + $0x8] sm:$0xff]
    %v187 = vld [vmem:[#allocation7 + $0x10] sm:$0xff]
    %v188 = vld [vmem:[#allocation7 + $0x18] sm:$0xff]
    %v189 = vld [vmem:[#allocation7 + $0x20] sm:$0xff]
    %v190 = vld [vmem:[#allocation7 + $0x28] sm:$0xff]
    %v191 = vld [vmem:[#allocation7 + $0x30] sm:$0xff]
    %v192 = vld [vmem:[#allocation7 + $0x38] sm:$0xff]
    %v193 = vld [vmem:[#allocation7 + $0x40] sm:$0xff]
    %v194 = vld [vmem:[#allocation7 + $0x48] sm:$0xff]
    %v195 = vld [vmem:[#allocation7 + $0x50] sm:$0xff]
    %v196 = vld [vmem:[#allocation7 + $0x58] sm:$0xff]
    %v197 = vld [vmem:[#allocation7 + $0x60] sm:$0xff]
    %v198 = vld [vmem:[#allocation7 + $0x68] sm:$0xff]
    %v199 = vld [vmem:[#allocation7 + $0x70] sm:$0xff]
    %v200 = vld [vmem:[#allocation7 + $0x78] sm:$0xff]
    %v201 = vld [vmem:[#allocation7 + $0x80] sm:$0xff]
    %v202 = vld [vmem:[#allocation7 + $0x88] sm:$0xff]
    %v203 = vld [vmem:[#allocation7 + $0x90] sm:$0xff]
    %v204 = vld [vmem:[#allocation7 + $0x98] sm:$0xff]
    %v205 = vld [vmem:[#allocation7 + $0xa0] sm:$0xff]
    %v206 = vld [vmem:[#allocation7 + $0xa8] sm:$0xff]
    %v207 = vld [vmem:[#allocation7 + $0xb0] sm:$0xff]
    %v208 = vld [vmem:[#allocation7 + $0xb8] sm:$0xff]
    %v209 = vld [vmem:[#allocation7 + $0xc0] sm:$0xff]
    %v210 = vld [vmem:[#allocation7 + $0xc8] sm:$0xff]
    %v211 = vld [vmem:[#allocation7 + $0xd0] sm:$0xff]
    %v212 = vld [vmem:[#allocation7 + $0xd8] sm:$0xff]
    %v213 = vld [vmem:[#allocation7 + $0xe0] sm:$0xff]
    %v214 = vld [vmem:[#allocation7 + $0xe8] sm:$0xff]
    %v215 = vld [vmem:[#allocation7 + $0xf0] sm:$0xff]
    %v216 = vld [vmem:[#allocation7 + $0xf8] sm:$0xff]
    %v217 = vld [vmem:[#allocation7 + $0x100] sm:$0xff]
    %v218 = vld [vmem:[#allocation7 + $0x108] sm:$0xff]
    %v219 = vld [vmem:[#allocation7 + $0x110] sm:$0xff]
    %v220 = vld [vmem:[#allocation7 + $0x118] sm:$0xff]
    %v221 = vld [vmem:[#allocation7 + $0x120] sm:$0xff]
    %v222 = vld [vmem:[#allocation7 + $0x128] sm:$0xff]
    %v223 = vld [vmem:[#allocation7 + $0x130] sm:$0xff]
    %v224 = vld [vmem:[#allocation7 + $0x138] sm:$0xff]
    %v225 = vld [vmem:[#allocation7 + $0x140] sm:$0xff]
    %v226 = vld [vmem:[#allocation7 + $0x148] sm:$0xff]
    %v227 = vld [vmem:[#allocation7 + $0x150] sm:$0xff]
    %v228 = vld [vmem:[#allocation7 + $0x158] sm:$0xff]
    %v229 = vld [vmem:[#allocation7 + $0x160] sm:$0xff]
    %v230 = vld [vmem:[#allocation7 + $0x168] sm:$0xff]
    %v231 = vld [vmem:[#allocation7 + $0x170] sm:$0xff]
    %v232 = vld [vmem:[#allocation7 + $0x178] sm:$0xff]
    %v233 = vld [vmem:[#allocation7 + $0x180] sm:$0xff]
    %v234 = vld [vmem:[#allocation7 + $0x188] sm:$0xff]
    %v235 = vld [vmem:[#allocation7 + $0x190] sm:$0xff]
    %v236 = vld [vmem:[#allocation7 + $0x198] sm:$0xff]
    %v237 = vld [vmem:[#allocation7 + $0x1a0] sm:$0xff]
    %v238 = vld [vmem:[#allocation7 + $0x1a8] sm:$0xff]
    %v239 = vld [vmem:[#allocation7 + $0x1b0] sm:$0xff]
    %v240 = vld [vmem:[#allocation7 + $0x1b8] sm:$0xff]
    %v241 = vld [vmem:[#allocation7 + $0x1c0] sm:$0xff]
    %v242 = vld [vmem:[#allocation7 + $0x1c8] sm:$0xff]
    %v243 = vld [vmem:[#allocation7 + $0x1d0] sm:$0xff]
    %v244 = vld [vmem:[#allocation7 + $0x1d8] sm:$0xff]
    %v245 = vld [vmem:[#allocation7 + $0x1e0] sm:$0xff]
    %v246 = vld [vmem:[#allocation7 + $0x1e8] sm:$0xff]
    %v247 = vld [vmem:[#allocation7 + $0x1f0] sm:$0xff]
    %v248 = vld [vmem:[#allocation7 + $0x1f8] sm:$0xff]
    %v249 = vld [vmem:[%s5] sm:$0xf]
    %v251 = vlaneseq
    %v252 = vshrl.u32 %v251, 7
    %v253 = vsub.s32 0, %v252
    %v254 = vrot.slane %v249, %v253
    %v255 = vlaneseq
    %v256 = vshrl.u32 %v255, 7
    %v257 = vsub.s32 1, %v256
    %v258 = vrot.slane %v249, %v257
    %v259 = vlaneseq
    %v260 = vshrl.u32 %v259, 7
    %v261 = vsub.s32 2, %v260
    %v262 = vrot.slane %v249, %v261
    %v263 = vlaneseq
    %v264 = vshrl.u32 %v263, 7
    %v265 = vsub.s32 3, %v264
    %v266 = vrot.slane %v249, %v265
    %271 = vmatprep.subr.mxu0 %v186
    %272 = vmatpush1.msra.mxu0 %v185
    %273 = vmatprep.subr.mxu0 %v190
    %274 = vmatpush1.msra.mxu0 %v189
    %275 = vmatprep.subr.mxu0 %v194
    %276 = vmatpush1.msra.mxu0 %v193
    %277 = vmatprep.subr.mxu0 %v198
    %278 = vmatpush1.msra.mxu0 %v197
    %279 = vmatprep.subr.mxu0 %v202
    %280 = vmatpush1.msra.mxu0 %v201
    %281 = vmatprep.subr.mxu0 %v206
    %282 = vmatpush1.msra.mxu0 %v205
    %283 = vmatprep.subr.mxu0 %v210
    %284 = vmatpush1.msra.mxu0 %v209
    %285 = vmatprep.subr.mxu0 %v214
    %286 = vmatpush1.msra.mxu0 %v213
    %287 = vmatprep.subr.mxu0 %v218
    %288 = vmatpush1.msra.mxu0 %v217
    %289 = vmatprep.subr.mxu0 %v222
    %290 = vmatpush1.msra.mxu0 %v221
    %291 = vmatprep.subr.mxu0 %v226
    %292 = vmatpush1.msra.mxu0 %v225
    %293 = vmatprep.subr.mxu0 %v230
    %294 = vmatpush1.msra.mxu0 %v229
    %295 = vmatprep.subr.mxu0 %v234
    %296 = vmatpush1.msra.mxu0 %v233
    %297 = vmatprep.subr.mxu0 %v238
    %298 = vmatpush1.msra.mxu0 %v237
    %299 = vmatprep.subr.mxu0 %v242
    %300 = vmatpush1.msra.mxu0 %v241
    %301 = vmatprep.subr.mxu0 %v246
    %302 = vmatpush1.msra.mxu0 %v245
    %303 = vmatprep.subr.mxu0 0.0
    %304 = vmatpush1.msra.mxu0 0.0
    %305 = vmatprep.subr.mxu0 0.0
    %306 = vmatpush1.msra.mxu0 0.0
    %307 = vmatprep.subr.mxu0 0.0
    %308 = vmatpush1.msra.mxu0 0.0
    %309 = vmatprep.subr.mxu0 0.0
    %310 = vmatpush1.msra.mxu0 0.0
    %311 = vmatprep.subr.mxu0 0.0
    %312 = vmatpush1.msra.mxu0 0.0
    %313 = vmatprep.subr.mxu0 0.0
    %314 = vmatpush1.msra.mxu0 0.0
    %315 = vmatprep.subr.mxu0 0.0
    %316 = vmatpush1.msra.mxu0 0.0
    %317 = vmatprep.subr.mxu0 0.0
    %318 = vmatpush1.msra.mxu0 0.0
    %319 = vmatprep.subr.mxu0 0.0
    %320 = vmatpush1.msra.mxu0 0.0
    %321 = vmatprep.subr.mxu0 0.0
    %322 = vmatpush1.msra.mxu0 0.0
    %323 = vmatprep.subr.mxu0 0.0
    %324 = vmatpush1.msra.mxu0 0.0
    %325 = vmatprep.subr.mxu0 0.0
    %326 = vmatpush1.msra.mxu0 0.0
    %327 = vmatprep.subr.mxu0 0.0
    %328 = vmatpush1.msra.mxu0 0.0
    %329 = vmatprep.subr.mxu0 0.0
    %330 = vmatpush1.msra.mxu0 0.0
    %331 = vmatprep.subr.mxu0 0.0
    %332 = vmatpush1.msra.mxu0 0.0
    %333 = vmatprep.subr.mxu0 0.0
    %334 = vmatpush1.msra.mxu0 0.0
    %335 = vmatprep.mubr.f32.mxu0 0.0
    %336 = vmatmul.mubr.f32.gmra.mrb[0].mxu0 %v184
    %v337 = vpop.f32.mrb[0].mxu0
    %v338 = vadd.f32 %v254, %v337
    %v339 = vpop.f32.mrb[0].mxu0
    %v340 = vadd.f32 %v258, %v339
    %341 = vdwg.mxu0
    %342 = vmatprep.subr.mxu0 %v188
    %343 = vmatpush1.msra.mxu0 %v187
    %344 = vmatprep.subr.mxu0 %v192
    %345 = vmatpush1.msra.mxu0 %v191
    %346 = vmatprep.subr.mxu0 %v196
    %347 = vmatpush1.msra.mxu0 %v195
    %348 = vmatprep.subr.mxu0 %v200
    %349 = vmatpush1.msra.mxu0 %v199
    %350 = vmatprep.subr.mxu0 %v204
    %351 = vmatpush1.msra.mxu0 %v203
    %352 = vmatprep.subr.mxu0 %v208
    %353 = vmatpush1.msra.mxu0 %v207
    %354 = vmatprep.subr.mxu0 %v212
    %355 = vmatpush1.msra.mxu0 %v211
    %356 = vmatprep.subr.mxu0 %v216
    %357 = vmatpush1.msra.mxu0 %v215
    %358 = vmatprep.subr.mxu0 %v220
    %359 = vmatpush1.msra.mxu0 %v219
    %360 = vmatprep.subr.mxu0 %v224
    %361 = vmatpush1.msra.mxu0 %v223
    %362 = vmatprep.subr.mxu0 %v228
    %363 = vmatpush1.msra.mxu0 %v227
    %364 = vmatprep.subr.mxu0 %v232
    %365 = vmatpush1.msra.mxu0 %v231
    %366 = vmatprep.subr.mxu0 %v236
    %367 = vmatpush1.msra.mxu0 %v235
    %368 = vmatprep.subr.mxu0 %v240
    %369 = vmatpush1.msra.mxu0 %v239
    %370 = vmatprep.subr.mxu0 %v244
    %371 = vmatpush1.msra.mxu0 %v243
    %372 = vmatprep.subr.mxu0 %v248
    %373 = vmatpush1.msra.mxu0 %v247
    %374 = vmatprep.subr.mxu0 0.0
    %375 = vmatpush1.msra.mxu0 0.0
    %376 = vmatprep.subr.mxu0 0.0
    %377 = vmatpush1.msra.mxu0 0.0
    %378 = vmatprep.subr.mxu0 0.0
    %379 = vmatpush1.msra.mxu0 0.0
    %380 = vmatprep.subr.mxu0 0.0
    %381 = vmatpush1.msra.mxu0 0.0
    %382 = vmatprep.subr.mxu0 0.0
    %383 = vmatpush1.msra.mxu0 0.0
    %384 = vmatprep.subr.mxu0 0.0
    %385 = vmatpush1.msra.mxu0 0.0
    %386 = vmatprep.subr.mxu0 0.0
    %387 = vmatpush1.msra.mxu0 0.0
    %388 = vmatprep.subr.mxu0 0.0
    %389 = vmatpush1.msra.mxu0 0.0
    %390 = vmatprep.subr.mxu0 0.0
    %391 = vmatpush1.msra.mxu0 0.0
    %392 = vmatprep.subr.mxu0 0.0
    %393 = vmatpush1.msra.mxu0 0.0
    %394 = vmatprep.subr.mxu0 0.0
    %395 = vmatpush1.msra.mxu0 0.0
    %396 = vmatprep.subr.mxu0 0.0
    %397 = vmatpush1.msra.mxu0 0.0
    %398 = vmatprep.subr.mxu0 0.0
    %399 = vmatpush1.msra.mxu0 0.0
    %400 = vmatprep.subr.mxu0 0.0
    %401 = vmatpush1.msra.mxu0 0.0
    %402 = vmatprep.subr.mxu0 0.0
    %403 = vmatpush1.msra.mxu0 0.0
    %404 = vmatprep.subr.mxu0 0.0
    %405 = vmatpush1.msra.mxu0 0.0
    %406 = vmatprep.mubr.f32.mxu0 0.0
    %407 = vmatmul.mubr.f32.gmra.mrb[0].mxu0 %v184
    %v408 = vpop.f32.mrb[0].mxu0
    %v409 = vadd.f32 %v262, %v408
    %v410 = vpop.f32.mrb[0].mxu0
    %v411 = vadd.f32 %v266, %v410
    %412 = vdwg.mxu0
    %v413 = vld [vmem:[#allocation8] sm:$0xff]
    %v414 = vld [vmem:[#allocation8 + $0x8] sm:$0xff]
    %v415 = vld [vmem:[#allocation8 + $0x10] sm:$0xff]
    %v416 = vld [vmem:[#allocation8 + $0x18] sm:$0xff]
    %v417 = vld [vmem:[#allocation8 + $0x20] sm:$0xff]
    %v418 = vld [vmem:[#allocation8 + $0x28] sm:$0xff]
    %v419 = vld [vmem:[#allocation8 + $0x30] sm:$0xff]
    %v420 = vld [vmem:[#allocation8 + $0x38] sm:$0xff]
    %v421 = vld [vmem:[#allocation8 + $0x40] sm:$0xff]
    %v422 = vld [vmem:[#allocation8 + $0x48] sm:$0xff]
    %v423 = vld [vmem:[#allocation8 + $0x50] sm:$0xff]
    %v424 = vld [vmem:[#allocation8 + $0x58] sm:$0xff]
    %v425 = vld [vmem:[#allocation8 + $0x60] sm:$0xff]
    %v426 = vld [vmem:[#allocation8 + $0x68] sm:$0xff]
    %v427 = vld [vmem:[#allocation8 + $0x70] sm:$0xff]
    %v428 = vld [vmem:[#allocation8 + $0x78] sm:$0xff]
    %v429 = vld [vmem:[#allocation8 + $0x80] sm:$0xff]
    %v430 = vld [vmem:[#allocation8 + $0x88] sm:$0xff]
    %v431 = vld [vmem:[#allocation8 + $0x90] sm:$0xff]
    %v432 = vld [vmem:[#allocation8 + $0x98] sm:$0xff]
    %v433 = vld [vmem:[#allocation8 + $0xa0] sm:$0xff]
    %v434 = vld [vmem:[#allocation8 + $0xa8] sm:$0xff]
    %v435 = vld [vmem:[#allocation8 + $0xb0] sm:$0xff]
    %v436 = vld [vmem:[#allocation8 + $0xb8] sm:$0xff]
    %v437 = vld [vmem:[#allocation8 + $0xc0] sm:$0xff]
    %v438 = vld [vmem:[#allocation8 + $0xc8] sm:$0xff]
    %v439 = vld [vmem:[#allocation8 + $0xd0] sm:$0xff]
    %v440 = vld [vmem:[#allocation8 + $0xd8] sm:$0xff]
    %v441 = vld [vmem:[#allocation8 + $0xe0] sm:$0xff]
    %v442 = vld [vmem:[#allocation8 + $0xe8] sm:$0xff]
    %v443 = vld [vmem:[#allocation8 + $0xf0] sm:$0xff]
    %v444 = vld [vmem:[#allocation8 + $0xf8] sm:$0xff]
    %v445 = vld [vmem:[#allocation8 + $0x100] sm:$0xff]
    %v446 = vld [vmem:[#allocation8 + $0x108] sm:$0xff]
    %v447 = vld [vmem:[#allocation8 + $0x110] sm:$0xff]
    %v448 = vld [vmem:[#allocation8 + $0x118] sm:$0xff]
    %v449 = vld [vmem:[#allocation8 + $0x120] sm:$0xff]
    %v450 = vld [vmem:[#allocation8 + $0x128] sm:$0xff]
    %v451 = vld [vmem:[#allocation8 + $0x130] sm:$0xff]
    %v452 = vld [vmem:[#allocation8 + $0x138] sm:$0xff]
    %v453 = vld [vmem:[#allocation8 + $0x140] sm:$0xff]
    %v454 = vld [vmem:[#allocation8 + $0x148] sm:$0xff]
    %v455 = vld [vmem:[#allocation8 + $0x150] sm:$0xff]
    %v456 = vld [vmem:[#allocation8 + $0x158] sm:$0xff]
    %v457 = vld [vmem:[#allocation8 + $0x160] sm:$0xff]
    %v458 = vld [vmem:[#allocation8 + $0x168] sm:$0xff]
    %v459 = vld [vmem:[#allocation8 + $0x170] sm:$0xff]
    %v460 = vld [vmem:[#allocation8 + $0x178] sm:$0xff]
    %v461 = vld [vmem:[#allocation8 + $0x180] sm:$0xff]
    %v462 = vld [vmem:[#allocation8 + $0x188] sm:$0xff]
    %v463 = vld [vmem:[#allocation8 + $0x190] sm:$0xff]
    %v464 = vld [vmem:[#allocation8 + $0x198] sm:$0xff]
    %v465 = vld [vmem:[#allocation8 + $0x1a0] sm:$0xff]
    %v466 = vld [vmem:[#allocation8 + $0x1a8] sm:$0xff]
    %v467 = vld [vmem:[#allocation8 + $0x1b0] sm:$0xff]
    %v468 = vld [vmem:[#allocation8 + $0x1b8] sm:$0xff]
    %v469 = vld [vmem:[#allocation8 + $0x1c0] sm:$0xff]
    %v470 = vld [vmem:[#allocation8 + $0x1c8] sm:$0xff]
    %v471 = vld [vmem:[#allocation8 + $0x1d0] sm:$0xff]
    %v472 = vld [vmem:[#allocation8 + $0x1d8] sm:$0xff]
    %v473 = vld [vmem:[#allocation8 + $0x1e0] sm:$0xff]
    %v474 = vld [vmem:[#allocation8 + $0x1e8] sm:$0xff]
    %v475 = vld [vmem:[#allocation8 + $0x1f0] sm:$0xff]
    %v476 = vld [vmem:[#allocation8 + $0x1f8] sm:$0xff]
    %477 = vmatprep.subr.mxu0 %v414
    %478 = vmatpush1.msra.mxu0 %v413
    %479 = vmatprep.subr.mxu0 %v418
    %480 = vmatpush1.msra.mxu0 %v417
    %481 = vmatprep.subr.mxu0 %v422
    %482 = vmatpush1.msra.mxu0 %v421
    %483 = vmatprep.subr.mxu0 %v426
    %484 = vmatpush1.msra.mxu0 %v425
    %485 = vmatprep.subr.mxu0 %v430
    %486 = vmatpush1.msra.mxu0 %v429
    %487 = vmatprep.subr.mxu0 %v434
    %488 = vmatpush1.msra.mxu0 %v433
    %489 = vmatprep.subr.mxu0 %v438
    %490 = vmatpush1.msra.mxu0 %v437
    %491 = vmatprep.subr.mxu0 %v442
    %492 = vmatpush1.msra.mxu0 %v441
    %493 = vmatprep.subr.mxu0 %v446
    %494 = vmatpush1.msra.mxu0 %v445
    %495 = vmatprep.subr.mxu0 %v450
    %496 = vmatpush1.msra.mxu0 %v449
    %497 = vmatprep.subr.mxu0 %v454
    %498 = vmatpush1.msra.mxu0 %v453
    %499 = vmatprep.subr.mxu0 %v458
    %500 = vmatpush1.msra.mxu0 %v457
    %501 = vmatprep.subr.mxu0 %v462
    %502 = vmatpush1.msra.mxu0 %v461
    %503 = vmatprep.subr.mxu0 %v466
    %504 = vmatpush1.msra.mxu0 %v465
    %505 = vmatprep.subr.mxu0 %v470
    %506 = vmatpush1.msra.mxu0 %v469
    %507 = vmatprep.subr.mxu0 %v474
    %508 = vmatpush1.msra.mxu0 %v473
    %509 = vmatprep.subr.mxu0 0.0
    %510 = vmatpush1.msra.mxu0 0.0
    %511 = vmatprep.subr.mxu0 0.0
    %512 = vmatpush1.msra.mxu0 0.0
    %513 = vmatprep.subr.mxu0 0.0
    %514 = vmatpush1.msra.mxu0 0.0
    %515 = vmatprep.subr.mxu0 0.0
    %516 = vmatpush1.msra.mxu0 0.0
    %517 = vmatprep.subr.mxu0 0.0
    %518 = vmatpush1.msra.mxu0 0.0
    %519 = vmatprep.subr.mxu0 0.0
    %520 = vmatpush1.msra.mxu0 0.0
    %521 = vmatprep.subr.mxu0 0.0
    %522 = vmatpush1.msra.mxu0 0.0
    %523 = vmatprep.subr.mxu0 0.0
    %524 = vmatpush1.msra.mxu0 0.0
    %525 = vmatprep.subr.mxu0 0.0
    %526 = vmatpush1.msra.mxu0 0.0
    %527 = vmatprep.subr.mxu0 0.0
    %528 = vmatpush1.msra.mxu0 0.0
    %529 = vmatprep.subr.mxu0 0.0
    %530 = vmatpush1.msra.mxu0 0.0
    %531 = vmatprep.subr.mxu0 0.0
    %532 = vmatpush1.msra.mxu0 0.0
    %533 = vmatprep.subr.mxu0 0.0
    %534 = vmatpush1.msra.mxu0 0.0
    %535 = vmatprep.subr.mxu0 0.0
    %536 = vmatpush1.msra.mxu0 0.0
    %537 = vmatprep.subr.mxu0 0.0
    %538 = vmatpush1.msra.mxu0 0.0
    %539 = vmatprep.subr.mxu0 0.0
    %540 = vmatpush1.msra.mxu0 0.0
    %541 = vmatprep.mubr.f32.mxu0 0.0
    %542 = vmatmul.mubr.f32.gmra.mrb[0].mxu0 0.0
    %v543 = vpop.f32.mrb[0].mxu0
    %v544 = vadd.f32 0.0, %v543
    %v545 = vpop.f32.mrb[0].mxu0
    %v546 = vadd.f32 0.0, %v545
    %547 = vdwg.mxu0
    %548 = vmatprep.subr.mxu0 %v416
    %549 = vmatpush1.msra.mxu0 %v415
    %550 = vmatprep.subr.mxu0 %v420
    %551 = vmatpush1.msra.mxu0 %v419
    %552 = vmatprep.subr.mxu0 %v424
    %553 = vmatpush1.msra.mxu0 %v423
    %554 = vmatprep.subr.mxu0 %v428
    %555 = vmatpush1.msra.mxu0 %v427
    %556 = vmatprep.subr.mxu0 %v432
    %557 = vmatpush1.msra.mxu0 %v431
    %558 = vmatprep.subr.mxu0 %v436
    %559 = vmatpush1.msra.mxu0 %v435
    %560 = vmatprep.subr.mxu0 %v440
    %561 = vmatpush1.msra.mxu0 %v439
    %562 = vmatprep.subr.mxu0 %v444
    %563 = vmatpush1.msra.mxu0 %v443
    %564 = vmatprep.subr.mxu0 %v448
    %565 = vmatpush1.msra.mxu0 %v447
    %566 = vmatprep.subr.mxu0 %v452
    %567 = vmatpush1.msra.mxu0 %v451
    %568 = vmatprep.subr.mxu0 %v456
    %569 = vmatpush1.msra.mxu0 %v455
    %570 = vmatprep.subr.mxu0 %v460
    %571 = vmatpush1.msra.mxu0 %v459
    %572 = vmatprep.subr.mxu0 %v464
    %573 = vmatpush1.msra.mxu0 %v463
    %574 = vmatprep.subr.mxu0 %v468
    %575 = vmatpush1.msra.mxu0 %v467
    %576 = vmatprep.subr.mxu0 %v472
    %577 = vmatpush1.msra.mxu0 %v471
    %578 = vmatprep.subr.mxu0 %v476
    %579 = vmatpush1.msra.mxu0 %v475
    %580 = vmatprep.subr.mxu0 0.0
    %581 = vmatpush1.msra.mxu0 0.0
    %582 = vmatprep.subr.mxu0 0.0
    %583 = vmatpush1.msra.mxu0 0.0
    %584 = vmatprep.subr.mxu0 0.0
    %585 = vmatpush1.msra.mxu0 0.0
    %586 = vmatprep.subr.mxu0 0.0
    %587 = vmatpush1.msra.mxu0 0.0
    %588 = vmatprep.subr.mxu0 0.0
    %589 = vmatpush1.msra.mxu0 0.0
    %590 = vmatprep.subr.mxu0 0.0
    %591 = vmatpush1.msra.mxu0 0.0
    %592 = vmatprep.subr.mxu0 0.0
    %593 = vmatpush1.msra.mxu0 0.0
    %594 = vmatprep.subr.mxu0 0.0
    %595 = vmatpush1.msra.mxu0 0.0
    %596 = vmatprep.subr.mxu0 0.0
    %597 = vmatpush1.msra.mxu0 0.0
    %598 = vmatprep.subr.mxu0 0.0
    %599 = vmatpush1.msra.mxu0 0.0
    %600 = vmatprep.subr.mxu0 0.0
    %601 = vmatpush1.msra.mxu0 0.0
    %602 = vmatprep.subr.mxu0 0.0
    %603 = vmatpush1.msra.mxu0 0.0
    %604 = vmatprep.subr.mxu0 0.0
    %605 = vmatpush1.msra.mxu0 0.0
    %606 = vmatprep.subr.mxu0 0.0
    %607 = vmatpush1.msra.mxu0 0.0
    %608 = vmatprep.subr.mxu0 0.0
    %609 = vmatpush1.msra.mxu0 0.0
    %610 = vmatprep.subr.mxu0 0.0
    %611 = vmatpush1.msra.mxu0 0.0
    %612 = vmatprep.mubr.f32.mxu0 0.0
    %613 = vmatmul.mubr.f32.gmra.mrb[0].mxu0 0.0
    %v614 = vpop.f32.mrb[0].mxu0
    %v615 = vadd.f32 0.0, %v614
    %v616 = vpop.f32.mrb[0].mxu0
    %v617 = vadd.f32 0.0, %v616
    %618 = vdwg.mxu0
    %v619 = vadd.f32 %v338, %v544
    %v620 = vadd.f32 %v340, %v546
    %v621 = vadd.f32 %v409, %v615
    %v622 = vadd.f32 %v411, %v617
    %v623 = vxor.u32 %v619, 2147483648
    %v624 = vmul.f32 %v623, 1.442695
    %v625 = vpow.pop %v624
    %v626 = vadd.f32 %v625, 1.0
    %v627 = vrcp.pop %v626
    %v628 = vmul.f32 1.0, %v627
    %v629 = vxor.u32 %v620, 2147483648
    %v630 = vmul.f32 %v629, 1.442695
    %v631 = vpow.pop %v630
    %v632 = vadd.f32 %v631, 1.0
    %v633 = vrcp.pop %v632
    %v634 = vmul.f32 1.0, %v633
    %v635 = vtanh.pop %v621
    %v636 = vxor.u32 %v622, 2147483648
    %v637 = vmul.f32 %v636, 1.442695
    %v638 = vpow.pop %v637
    %v639 = vadd.f32 %v638, 1.0
    %v640 = vrcp.pop %v639
    %v641 = vmul.f32 1.0, %v640
    %v642 = vmul.f32 %v634, 0.0
    %v643 = vmul.f32 %v628, %v635
    %v644 = vadd.f32 %v642, %v643
    %v645 = vtanh.pop %v644
    %v646 = vmul.f32 %v641, %v645
    %647 = vmatprep.subr.mxu0 %v414
    %648 = vmatpush1.msra.mxu0 %v413
    %649 = vmatprep.subr.mxu0 %v418
    %650 = vmatpush1.msra.mxu0 %v417
    %651 = vmatprep.subr.mxu0 %v422
    %652 = vmatpush1.msra.mxu0 %v421
    %653 = vmatprep.subr.mxu0 %v426
    %654 = vmatpush1.msra.mxu0 %v425
    %655 = vmatprep.subr.mxu0 %v430
    %656 = vmatpush1.msra.mxu0 %v429
    %657 = vmatprep.subr.mxu0 %v434
    %658 = vmatpush1.msra.mxu0 %v433
    %659 = vmatprep.subr.mxu0 %v438
    %660 = vmatpush1.msra.mxu0 %v437
    %661 = vmatprep.subr.mxu0 %v442
    %662 = vmatpush1.msra.mxu0 %v441
    %663 = vmatprep.subr.mxu0 %v446
    %664 = vmatpush1.msra.mxu0 %v445
    %665 = vmatprep.subr.mxu0 %v450
    %666 = vmatpush1.msra.mxu0 %v449
    %667 = vmatprep.subr.mxu0 %v454
    %668 = vmatpush1.msra.mxu0 %v453
    %669 = vmatprep.subr.mxu0 %v458
    %670 = vmatpush1.msra.mxu0 %v457
    %671 = vmatprep.subr.mxu0 %v462
    %672 = vmatpush1.msra.mxu0 %v461
    %673 = vmatprep.subr.mxu0 %v466
    %674 = vmatpush1.msra.mxu0 %v465
    %675 = vmatprep.subr.mxu0 %v470
    %676 = vmatpush1.msra.mxu0 %v469
    %677 = vmatprep.subr.mxu0 %v474
    %678 = vmatpush1.msra.mxu0 %v473
    %679 = vmatprep.subr.mxu0 0.0
    %680 = vmatpush1.msra.mxu0 0.0
    %681 = vmatprep.subr.mxu0 0.0
    %682 = vmatpush1.msra.mxu0 0.0
    %683 = vmatprep.subr.mxu0 0.0
    %684 = vmatpush1.msra.mxu0 0.0
    %685 = vmatprep.subr.mxu0 0.0
    %686 = vmatpush1.msra.mxu0 0.0
    %687 = vmatprep.subr.mxu0 0.0
    %688 = vmatpush1.msra.mxu0 0.0
    %689 = vmatprep.subr.mxu0 0.0
    %690 = vmatpush1.msra.mxu0 0.0
    %691 = vmatprep.subr.mxu0 0.0
    %692 = vmatpush1.msra.mxu0 0.0
    %693 = vmatprep.subr.mxu0 0.0
    %694 = vmatpush1.msra.mxu0 0.0
    %695 = vmatprep.subr.mxu0 0.0
    %696 = vmatpush1.msra.mxu0 0.0
    %697 = vmatprep.subr.mxu0 0.0
    %698 = vmatpush1.msra.mxu0 0.0
    %699 = vmatprep.subr.mxu0 0.0
    %700 = vmatpush1.msra.mxu0 0.0
    %701 = vmatprep.subr.mxu0 0.0
    %702 = vmatpush1.msra.mxu0 0.0
    %703 = vmatprep.subr.mxu0 0.0
    %704 = vmatpush1.msra.mxu0 0.0
    %705 = vmatprep.subr.mxu0 0.0
    %706 = vmatpush1.msra.mxu0 0.0
    %707 = vmatprep.subr.mxu0 0.0
    %708 = vmatpush1.msra.mxu0 0.0
    %709 = vmatprep.subr.mxu0 0.0
    %710 = vmatpush1.msra.mxu0 0.0
    %711 = vmatprep.mubr.f32.mxu0 0.0
    %712 = vmatmul.mubr.f32.gmra.mrb[0].mxu0 %v646
    %v713 = vpop.f32.mrb[0].mxu0
    %v714 = vadd.f32 0.0, %v713
    %v715 = vpop.f32.mrb[0].mxu0
    %v716 = vadd.f32 0.0, %v715
    %717 = vdwg.mxu0
    %718 = vmatprep.subr.mxu0 %v416
    %719 = vmatpush1.msra.mxu0 %v415
    %720 = vmatprep.subr.mxu0 %v420
    %721 = vmatpush1.msra.mxu0 %v419
    %722 = vmatprep.subr.mxu0 %v424
    %723 = vmatpush1.msra.mxu0 %v423
    %724 = vmatprep.subr.mxu0 %v428
    %725 = vmatpush1.msra.mxu0 %v427
    %726 = vmatprep.subr.mxu0 %v432
    %727 = vmatpush1.msra.mxu0 %v431
    %728 = vmatprep.subr.mxu0 %v436
    %729 = vmatpush1.msra.mxu0 %v435
    %730 = vmatprep.subr.mxu0 %v440
    %731 = vmatpush1.msra.mxu0 %v439
    %732 = vmatprep.subr.mxu0 %v444
    %733 = vmatpush1.msra.mxu0 %v443
    %734 = vmatprep.subr.mxu0 %v448
    %735 = vmatpush1.msra.mxu0 %v447
    %736 = vmatprep.subr.mxu0 %v452
    %737 = vmatpush1.msra.mxu0 %v451
    %738 = vmatprep.subr.mxu0 %v456
    %739 = vmatpush1.msra.mxu0 %v455
    %740 = vmatprep.subr.mxu0 %v460
    %741 = vmatpush1.msra.mxu0 %v459
    %742 = vmatprep.subr.mxu0 %v464
    %743 = vmatpush1.msra.mxu0 %v463
    %744 = vmatprep.subr.mxu0 %v468
    %745 = vmatpush1.msra.mxu0 %v467
    %746 = vmatprep.subr.mxu0 %v472
    %747 = vmatpush1.msra.mxu0 %v471
    %748 = vmatprep.subr.mxu0 %v476
    %749 = vmatpush1.msra.mxu0 %v475
    %750 = vmatprep.subr.mxu0 0.0
    %751 = vmatpush1.msra.mxu0 0.0
    %752 = vmatprep.subr.mxu0 0.0
    %753 = vmatpush1.msra.mxu0 0.0
    %754 = vmatprep.subr.mxu0 0.0
    %755 = vmatpush1.msra.mxu0 0.0
    %756 = vmatprep.subr.mxu0 0.0
    %757 = vmatpush1.msra.mxu0 0.0
    %758 = vmatprep.subr.mxu0 0.0
    %759 = vmatpush1.msra.mxu0 0.0
    %760 = vmatprep.subr.mxu0 0.0
    %761 = vmatpush1.msra.mxu0 0.0
    %762 = vmatprep.subr.mxu0 0.0
    %763 = vmatpush1.msra.mxu0 0.0
    %764 = vmatprep.subr.mxu0 0.0
    %765 = vmatpush1.msra.mxu0 0.0
    %766 = vmatprep.subr.mxu0 0.0
    %767 = vmatpush1.msra.mxu0 0.0
    %768 = vmatprep.subr.mxu0 0.0
    %769 = vmatpush1.msra.mxu0 0.0
    %770 = vmatprep.subr.mxu0 0.0
    %771 = vmatpush1.msra.mxu0 0.0
    %772 = vmatprep.subr.mxu0 0.0
    %773 = vmatpush1.msra.mxu0 0.0
    %774 = vmatprep.subr.mxu0 0.0
    %775 = vmatpush1.msra.mxu0 0.0
    %776 = vmatprep.subr.mxu0 0.0
    %777 = vmatpush1.msra.mxu0 0.0
    %778 = vmatprep.subr.mxu0 0.0
    %779 = vmatpush1.msra.mxu0 0.0
    %780 = vmatprep.subr.mxu0 0.0
    %781 = vmatpush1.msra.mxu0 0.0
    %782 = vmatprep.mubr.f32.mxu0 0.0
    %783 = vmatmul.mubr.f32.gmra.mrb[0].mxu0 %v646
    %v784 = vpop.f32.mrb[0].mxu0
    %v785 = vadd.f32 0.0, %v784
    %v786 = vpop.f32.mrb[0].mxu0
    %v787 = vadd.f32 0.0, %v786
    %788 = vdwg.mxu0
    %v793 = vrot.slane %v714, 7
    %v794 = vrot.slane %v716, 7
    %v795 = vrot.slane %v785, 7
    %v796 = vrot.slane %v787, 7
    %v801 = vadd.f32 %v338, %v793
    %v802 = vadd.f32 %v340, %v794
    %v803 = vadd.f32 %v409, %v795
    %v804 = vadd.f32 %v411, %v796
    %v805 = vxor.u32 %v801, 2147483648
    %v806 = vmul.f32 %v805, 1.442695
    %v807 = vpow.pop %v806
    %v808 = vadd.f32 %v807, 1.0
    %v809 = vrcp.pop %v808
    %v810 = vmul.f32 1.0, %v809
    %v811 = vxor.u32 %v802, 2147483648
    %v812 = vmul.f32 %v811, 1.442695
    %v813 = vpow.pop %v812
    %v814 = vadd.f32 %v813, 1.0
    %v815 = vrcp.pop %v814
    %v816 = vmul.f32 1.0, %v815
    %v817 = vtanh.pop %v803
    %v818 = vxor.u32 %v804, 2147483648
    %v819 = vmul.f32 %v818, 1.442695
    %v820 = vpow.pop %v819
    %v821 = vadd.f32 %v820, 1.0
    %v822 = vrcp.pop %v821
    %v823 = vmul.f32 1.0, %v822
    %v825 = vrot.slane %v644, 7
    %v827 = vmul.f32 %v816, %v825
    %v828 = vmul.f32 %v810, %v817
    %v829 = vadd.f32 %v827, %v828
    %v830 = vtanh.pop %v829
    %v831 = vmul.f32 %v823, %v830
    %v833 = vrot.slane %v831, 1
    %835 = vmatprep.subr.mxu0 %v414
    %836 = vmatpush1.msra.mxu0 %v413
    %837 = vmatprep.subr.mxu0 %v418
    %838 = vmatpush1.msra.mxu0 %v417
    %839 = vmatprep.subr.mxu0 %v422
    %840 = vmatpush1.msra.mxu0 %v421
    %841 = vmatprep.subr.mxu0 %v426
    %842 = vmatpush1.msra.mxu0 %v425
    %843 = vmatprep.subr.mxu0 %v430
    %844 = vmatpush1.msra.mxu0 %v429
    %845 = vmatprep.subr.mxu0 %v434
    %846 = vmatpush1.msra.mxu0 %v433
    %847 = vmatprep.subr.mxu0 %v438
    %848 = vmatpush1.msra.mxu0 %v437
    %849 = vmatprep.subr.mxu0 %v442
    %850 = vmatpush1.msra.mxu0 %v441
    %851 = vmatprep.subr.mxu0 %v446
    %852 = vmatpush1.msra.mxu0 %v445
    %853 = vmatprep.subr.mxu0 %v450
    %854 = vmatpush1.msra.mxu0 %v449
    %855 = vmatprep.subr.mxu0 %v454
    %856 = vmatpush1.msra.mxu0 %v453
    %857 = vmatprep.subr.mxu0 %v458
    %858 = vmatpush1.msra.mxu0 %v457
    %859 = vmatprep.subr.mxu0 %v462
    %860 = vmatpush1.msra.mxu0 %v461
    %861 = vmatprep.subr.mxu0 %v466
    %862 = vmatpush1.msra.mxu0 %v465
    %863 = vmatprep.subr.mxu0 %v470
    %864 = vmatpush1.msra.mxu0 %v469
    %865 = vmatprep.subr.mxu0 %v474
    %866 = vmatpush1.msra.mxu0 %v473
    %867 = vmatprep.subr.mxu0 0.0
    %868 = vmatpush1.msra.mxu0 0.0
    %869 = vmatprep.subr.mxu0 0.0
    %870 = vmatpush1.msra.mxu0 0.0
    %871 = vmatprep.subr.mxu0 0.0
    %872 = vmatpush1.msra.mxu0 0.0
    %873 = vmatprep.subr.mxu0 0.0
    %874 = vmatpush1.msra.mxu0 0.0
    %875 = vmatprep.subr.mxu0 0.0
    %876 = vmatpush1.msra.mxu0 0.0
    %877 = vmatprep.subr.mxu0 0.0
    %878 = vmatpush1.msra.mxu0 0.0
    %879 = vmatprep.subr.mxu0 0.0
    %880 = vmatpush1.msra.mxu0 0.0
    %881 = vmatprep.subr.mxu0 0.0
    %882 = vmatpush1.msra.mxu0 0.0
    %883 = vmatprep.subr.mxu0 0.0
    %884 = vmatpush1.msra.mxu0 0.0
    %885 = vmatprep.subr.mxu0 0.0
    %886 = vmatpush1.msra.mxu0 0.0
    %887 = vmatprep.subr.mxu0 0.0
    %888 = vmatpush1.msra.mxu0 0.0
    %889 = vmatprep.subr.mxu0 0.0
    %890 = vmatpush1.msra.mxu0 0.0
    %891 = vmatprep.subr.mxu0 0.0
    %892 = vmatpush1.msra.mxu0 0.0
    %893 = vmatprep.subr.mxu0 0.0
    %894 = vmatpush1.msra.mxu0 0.0
    %895 = vmatprep.subr.mxu0 0.0
    %896 = vmatpush1.msra.mxu0 0.0
    %897 = vmatprep.subr.mxu0 0.0
    %898 = vmatpush1.msra.mxu0 0.0
    %899 = vmatprep.mubr.f32.mxu0 0.0
    %900 = vmatmul.mubr.f32.gmra.mrb[0].mxu0 %v833
    %v901 = vpop.f32.mrb[0].mxu0
    %v902 = vadd.f32 0.0, %v901
    %v903 = vpop.f32.mrb[0].mxu0
    %v904 = vadd.f32 0.0, %v903
    %905 = vdwg.mxu0
    %906 = vmatprep.subr.mxu0 %v416
    %907 = vmatpush1.msra.mxu0 %v415
    %908 = vmatprep.subr.mxu0 %v420
    %909 = vmatpush1.msra.mxu0 %v419
    %910 = vmatprep.subr.mxu0 %v424
    %911 = vmatpush1.msra.mxu0 %v423
    %912 = vmatprep.subr.mxu0 %v428
    %913 = vmatpush1.msra.mxu0 %v427
    %914 = vmatprep.subr.mxu0 %v432
    %915 = vmatpush1.msra.mxu0 %v431
    %916 = vmatprep.subr.mxu0 %v436
    %917 = vmatpush1.msra.mxu0 %v435
    %918 = vmatprep.subr.mxu0 %v440
    %919 = vmatpush1.msra.mxu0 %v439
    %920 = vmatprep.subr.mxu0 %v444
    %921 = vmatpush1.msra.mxu0 %v443
    %922 = vmatprep.subr.mxu0 %v448
    %923 = vmatpush1.msra.mxu0 %v447
    %924 = vmatprep.subr.mxu0 %v452
    %925 = vmatpush1.msra.mxu0 %v451
    %926 = vmatprep.subr.mxu0 %v456
    %927 = vmatpush1.msra.mxu0 %v455
    %928 = vmatprep.subr.mxu0 %v460
    %929 = vmatpush1.msra.mxu0 %v459
    %930 = vmatprep.subr.mxu0 %v464
    %931 = vmatpush1.msra.mxu0 %v463
    %932 = vmatprep.subr.mxu0 %v468
    %933 = vmatpush1.msra.mxu0 %v467
    %934 = vmatprep.subr.mxu0 %v472
    %935 = vmatpush1.msra.mxu0 %v471
    %936 = vmatprep.subr.mxu0 %v476
    %937 = vmatpush1.msra.mxu0 %v475
    %938 = vmatprep.subr.mxu0 0.0
    %939 = vmatpush1.msra.mxu0 0.0
    %940 = vmatprep.subr.mxu0 0.0
    %941 = vmatpush1.msra.mxu0 0.0
    %942 = vmatprep.subr.mxu0 0.0
    %943 = vmatpush1.msra.mxu0 0.0
    %944 = vmatprep.subr.mxu0 0.0
    %945 = vmatpush1.msra.mxu0 0.0
    %946 = vmatprep.subr.mxu0 0.0
    %947 = vmatpush1.msra.mxu0 0.0
    %948 = vmatprep.subr.mxu0 0.0
    %949 = vmatpush1.msra.mxu0 0.0
    %950 = vmatprep.subr.mxu0 0.0
    %951 = vmatpush1.msra.mxu0 0.0
    %952 = vmatprep.subr.mxu0 0.0
    %953 = vmatpush1.msra.mxu0 0.0
    %954 = vmatprep.subr.mxu0 0.0
    %955 = vmatpush1.msra.mxu0 0.0
    %956 = vmatprep.subr.mxu0 0.0
    %957 = vmatpush1.msra.mxu0 0.0
    %958 = vmatprep.subr.mxu0 0.0
    %959 = vmatpush1.msra.mxu0 0.0
    %960 = vmatprep.subr.mxu0 0.0
    %961 = vmatpush1.msra.mxu0 0.0
    %962 = vmatprep.subr.mxu0 0.0
    %963 = vmatpush1.msra.mxu0 0.0
    %964 = vmatprep.subr.mxu0 0.0
    %965 = vmatpush1.msra.mxu0 0.0
    %966 = vmatprep.subr.mxu0 0.0
    %967 = vmatpush1.msra.mxu0 0.0
    %968 = vmatprep.subr.mxu0 0.0
    %969 = vmatpush1.msra.mxu0 0.0
    %970 = vmatprep.mubr.f32.mxu0 0.0
    %971 = vmatmul.mubr.f32.gmra.mrb[0].mxu0 %v833
    %v972 = vpop.f32.mrb[0].mxu0
    %v973 = vadd.f32 0.0, %v972
    %v974 = vpop.f32.mrb[0].mxu0
    %v975 = vadd.f32 0.0, %v974
    %976 = vdwg.mxu0
    %v981 = vrot.slane %v902, 6
    %v982 = vrot.slane %v904, 6
    %v983 = vrot.slane %v973, 6
    %v984 = vrot.slane %v975, 6
    %v989 = vadd.f32 %v338, %v981
    %v990 = vadd.f32 %v340, %v982
    %v991 = vadd.f32 %v409, %v983
    %v992 = vadd.f32 %v411, %v984
    %v993 = vxor.u32 %v989, 2147483648
    %v994 = vmul.f32 %v993, 1.442695
    %v995 = vpow.pop %v994
    %v996 = vadd.f32 %v995, 1.0
    %v997 = vrcp.pop %v996
    %v998 = vmul.f32 1.0, %v997
    %v999 = vxor.u32 %v990, 2147483648
    %v1000 = vmul.f32 %v999, 1.442695
    %v1001 = vpow.pop %v1000
    %v1002 = vadd.f32 %v1001, 1.0
    %v1003 = vrcp.pop %v1002
    %v1004 = vmul.f32 1.0, %v1003
    %v1005 = vtanh.pop %v991
    %v1006 = vxor.u32 %v992, 2147483648
    %v1007 = vmul.f32 %v1006, 1.442695
    %v1008 = vpow.pop %v1007
    %v1009 = vadd.f32 %v1008, 1.0
    %v1010 = vrcp.pop %v1009
    %v1011 = vmul.f32 1.0, %v1010
    %v1013 = vrot.slane %v829, 7
    %v1015 = vmul.f32 %v1004, %v1013
    %v1016 = vmul.f32 %v998, %v1005
    %v1017 = vadd.f32 %v1015, %v1016
    %v1018 = vtanh.pop %v1017
    %v1019 = vmul.f32 %v1011, %v1018
    %v1021 = vrot.slane %v1019, 2
    %1023 = vmatprep.subr.mxu0 %v414
    %1024 = vmatpush1.msra.mxu0 %v413
    %1025 = vmatprep.subr.mxu0 %v418
    %1026 = vmatpush1.msra.mxu0 %v417
    %1027 = vmatprep.subr.mxu0 %v422
    %1028 = vmatpush1.msra.mxu0 %v421
    %1029 = vmatprep.subr.mxu0 %v426
    %1030 = vmatpush1.msra.mxu0 %v425
    %1031 = vmatprep.subr.mxu0 %v430
    %1032 = vmatpush1.msra.mxu0 %v429
    %1033 = vmatprep.subr.mxu0 %v434
    %1034 = vmatpush1.msra.mxu0 %v433
    %1035 = vmatprep.subr.mxu0 %v438
    %1036 = vmatpush1.msra.mxu0 %v437
    %1037 = vmatprep.subr.mxu0 %v442
    %1038 = vmatpush1.msra.mxu0 %v441
    %1039 = vmatprep.subr.mxu0 %v446
    %1040 = vmatpush1.msra.mxu0 %v445
    %1041 = vmatprep.subr.mxu0 %v450
    %1042 = vmatpush1.msra.mxu0 %v449
    %1043 = vmatprep.subr.mxu0 %v454
    %1044 = vmatpush1.msra.mxu0 %v453
    %1045 = vmatprep.subr.mxu0 %v458
    %1046 = vmatpush1.msra.mxu0 %v457
    %1047 = vmatprep.subr.mxu0 %v462
    %1048 = vmatpush1.msra.mxu0 %v461
    %1049 = vmatprep.subr.mxu0 %v466
    %1050 = vmatpush1.msra.mxu0 %v465
    %1051 = vmatprep.subr.mxu0 %v470
    %1052 = vmatpush1.msra.mxu0 %v469
    %1053 = vmatprep.subr.mxu0 %v474
    %1054 = vmatpush1.msra.mxu0 %v473
    %1055 = vmatprep.subr.mxu0 0.0
    %1056 = vmatpush1.msra.mxu0 0.0
    %1057 = vmatprep.subr.mxu0 0.0
    %1058 = vmatpush1.msra.mxu0 0.0
    %1059 = vmatprep.subr.mxu0 0.0
    %1060 = vmatpush1.msra.mxu0 0.0
    %1061 = vmatprep.subr.mxu0 0.0
    %1062 = vmatpush1.msra.mxu0 0.0
    %1063 = vmatprep.subr.mxu0 0.0
    %1064 = vmatpush1.msra.mxu0 0.0
    %1065 = vmatprep.subr.mxu0 0.0
    %1066 = vmatpush1.msra.mxu0 0.0
    %1067 = vmatprep.subr.mxu0 0.0
    %1068 = vmatpush1.msra.mxu0 0.0
    %1069 = vmatprep.subr.mxu0 0.0
    %1070 = vmatpush1.msra.mxu0 0.0
    %1071 = vmatprep.subr.mxu0 0.0
    %1072 = vmatpush1.msra.mxu0 0.0
    %1073 = vmatprep.subr.mxu0 0.0
    %1074 = vmatpush1.msra.mxu0 0.0
    %1075 = vmatprep.subr.mxu0 0.0
    %1076 = vmatpush1.msra.mxu0 0.0
    %1077 = vmatprep.subr.mxu0 0.0
    %1078 = vmatpush1.msra.mxu0 0.0
    %1079 = vmatprep.subr.mxu0 0.0
    %1080 = vmatpush1.msra.mxu0 0.0
    %1081 = vmatprep.subr.mxu0 0.0
    %1082 = vmatpush1.msra.mxu0 0.0
    %1083 = vmatprep.subr.mxu0 0.0
    %1084 = vmatpush1.msra.mxu0 0.0
    %1085 = vmatprep.subr.mxu0 0.0
    %1086 = vmatpush1.msra.mxu0 0.0
    %1087 = vmatprep.mubr.f32.mxu0 0.0
    %1088 = vmatmul.mubr.f32.gmra.mrb[0].mxu0 %v1021
    %v1089 = vpop.f32.mrb[0].mxu0
    %v1090 = vadd.f32 0.0, %v1089
    %v1091 = vpop.f32.mrb[0].mxu0
    %v1092 = vadd.f32 0.0, %v1091
    %1093 = vdwg.mxu0
    %1094 = vmatprep.subr.mxu0 %v416
    %1095 = vmatpush1.msra.mxu0 %v415
    %1096 = vmatprep.subr.mxu0 %v420
    %1097 = vmatpush1.msra.mxu0 %v419
    %1098 = vmatprep.subr.mxu0 %v424
    %1099 = vmatpush1.msra.mxu0 %v423
    %1100 = vmatprep.subr.mxu0 %v428
    %1101 = vmatpush1.msra.mxu0 %v427
    %1102 = vmatprep.subr.mxu0 %v432
    %1103 = vmatpush1.msra.mxu0 %v431
    %1104 = vmatprep.subr.mxu0 %v436
    %1105 = vmatpush1.msra.mxu0 %v435
    %1106 = vmatprep.subr.mxu0 %v440
    %1107 = vmatpush1.msra.mxu0 %v439
    %1108 = vmatprep.subr.mxu0 %v444
    %1109 = vmatpush1.msra.mxu0 %v443
    %1110 = vmatprep.subr.mxu0 %v448
    %1111 = vmatpush1.msra.mxu0 %v447
    %1112 = vmatprep.subr.mxu0 %v452
    %1113 = vmatpush1.msra.mxu0 %v451
    %1114 = vmatprep.subr.mxu0 %v456
    %1115 = vmatpush1.msra.mxu0 %v455
    %1116 = vmatprep.subr.mxu0 %v460
    %1117 = vmatpush1.msra.mxu0 %v459
    %1118 = vmatprep.subr.mxu0 %v464
    %1119 = vmatpush1.msra.mxu0 %v463
    %1120 = vmatprep.subr.mxu0 %v468
    %1121 = vmatpush1.msra.mxu0 %v467
    %1122 = vmatprep.subr.mxu0 %v472
    %1123 = vmatpush1.msra.mxu0 %v471
    %1124 = vmatprep.subr.mxu0 %v476
    %1125 = vmatpush1.msra.mxu0 %v475
    %1126 = vmatprep.subr.mxu0 0.0
    %1127 = vmatpush1.msra.mxu0 0.0
    %1128 = vmatprep.subr.mxu0 0.0
    %1129 = vmatpush1.msra.mxu0 0.0
    %1130 = vmatprep.subr.mxu0 0.0
    %1131 = vmatpush1.msra.mxu0 0.0
    %1132 = vmatprep.subr.mxu0 0.0
    %1133 = vmatpush1.msra.mxu0 0.0
    %1134 = vmatprep.subr.mxu0 0.0
    %1135 = vmatpush1.msra.mxu0 0.0
    %1136 = vmatprep.subr.mxu0 0.0
    %1137 = vmatpush1.msra.mxu0 0.0
    %1138 = vmatprep.subr.mxu0 0.0
    %1139 = vmatpush1.msra.mxu0 0.0
    %1140 = vmatprep.subr.mxu0 0.0
    %1141 = vmatpush1.msra.mxu0 0.0
    %1142 = vmatprep.subr.mxu0 0.0
    %1143 = vmatpush1.msra.mxu0 0.0
    %1144 = vmatprep.subr.mxu0 0.0
    %1145 = vmatpush1.msra.mxu0 0.0
    %1146 = vmatprep.subr.mxu0 0.0
    %1147 = vmatpush1.msra.mxu0 0.0
    %1148 = vmatprep.subr.mxu0 0.0
    %1149 = vmatpush1.msra.mxu0 0.0
    %1150 = vmatprep.subr.mxu0 0.0
    %1151 = vmatpush1.msra.mxu0 0.0
    %1152 = vmatprep.subr.mxu0 0.0
    %1153 = vmatpush1.msra.mxu0 0.0
    %1154 = vmatprep.subr.mxu0 0.0
    %1155 = vmatpush1.msra.mxu0 0.0
    %1156 = vmatprep.subr.mxu0 0.0
    %1157 = vmatpush1.msra.mxu0 0.0
    %1158 = vmatprep.mubr.f32.mxu0 0.0
    %1159 = vmatmul.mubr.f32.gmra.mrb[0].mxu0 %v1021
    %v1160 = vpop.f32.mrb[0].mxu0
    %v1161 = vadd.f32 0.0, %v1160
    %v1162 = vpop.f32.mrb[0].mxu0
    %v1163 = vadd.f32 0.0, %v1162
    %1164 = vdwg.mxu0
    %v1169 = vrot.slane %v1090, 5
    %v1170 = vrot.slane %v1092, 5
    %v1171 = vrot.slane %v1161, 5
    %v1172 = vrot.slane %v1163, 5
    %v1177 = vadd.f32 %v338, %v1169
    %v1178 = vadd.f32 %v340, %v1170
    %v1179 = vadd.f32 %v409, %v1171
    %v1180 = vadd.f32 %v411, %v1172
    %v1181 = vxor.u32 %v1177, 2147483648
    %v1182 = vmul.f32 %v1181, 1.442695
    %v1183 = vpow.pop %v1182
    %v1184 = vadd.f32 %v1183, 1.0
    %v1185 = vrcp.pop %v1184
    %v1186 = vmul.f32 1.0, %v1185
    %v1187 = vxor.u32 %v1178, 2147483648
    %v1188 = vmul.f32 %v1187, 1.442695
    %v1189 = vpow.pop %v1188
    %v1190 = vadd.f32 %v1189, 1.0
    %v1191 = vrcp.pop %v1190
    %v1192 = vmul.f32 1.0, %v1191
    %v1193 = vtanh.pop %v1179
    %v1194 = vxor.u32 %v1180, 2147483648
    %v1195 = vmul.f32 %v1194, 1.442695
    %v1196 = vpow.pop %v1195
    %v1197 = vadd.f32 %v1196, 1.0
    %v1198 = vrcp.pop %v1197
    %v1199 = vmul.f32 1.0, %v1198
    %v1201 = vrot.slane %v1017, 7
    %v1203 = vmul.f32 %v1192, %v1201
    %v1204 = vmul.f32 %v1186, %v1193
    %v1205 = vadd.f32 %v1203, %v1204
    %v1206 = vtanh.pop %v1205
    %v1207 = vmul.f32 %v1199, %v1206
    %v1209 = vrot.slane %v1207, 3
    %1211 = vmatprep.subr.mxu0 %v414
    %1212 = vmatpush1.msra.mxu0 %v413
    %1213 = vmatprep.subr.mxu0 %v418
    %1214 = vmatpush1.msra.mxu0 %v417
    %1215 = vmatprep.subr.mxu0 %v422
    %1216 = vmatpush1.msra.mxu0 %v421
    %1217 = vmatprep.subr.mxu0 %v426
    %1218 = vmatpush1.msra.mxu0 %v425
    %1219 = vmatprep.subr.mxu0 %v430
    %1220 = vmatpush1.msra.mxu0 %v429
    %1221 = vmatprep.subr.mxu0 %v434
    %1222 = vmatpush1.msra.mxu0 %v433
    %1223 = vmatprep.subr.mxu0 %v438
    %1224 = vmatpush1.msra.mxu0 %v437
    %1225 = vmatprep.subr.mxu0 %v442
    %1226 = vmatpush1.msra.mxu0 %v441
    %1227 = vmatprep.subr.mxu0 %v446
    %1228 = vmatpush1.msra.mxu0 %v445
    %1229 = vmatprep.subr.mxu0 %v450
    %1230 = vmatpush1.msra.mxu0 %v449
    %1231 = vmatprep.subr.mxu0 %v454
    %1232 = vmatpush1.msra.mxu0 %v453
    %1233 = vmatprep.subr.mxu0 %v458
    %1234 = vmatpush1.msra.mxu0 %v457
    %1235 = vmatprep.subr.mxu0 %v462
    %1236 = vmatpush1.msra.mxu0 %v461
    %1237 = vmatprep.subr.mxu0 %v466
    %1238 = vmatpush1.msra.mxu0 %v465
    %1239 = vmatprep.subr.mxu0 %v470
    %1240 = vmatpush1.msra.mxu0 %v469
    %1241 = vmatprep.subr.mxu0 %v474
    %1242 = vmatpush1.msra.mxu0 %v473
    %1243 = vmatprep.subr.mxu0 0.0
    %1244 = vmatpush1.msra.mxu0 0.0
    %1245 = vmatprep.subr.mxu0 0.0
    %1246 = vmatpush1.msra.mxu0 0.0
    %1247 = vmatprep.subr.mxu0 0.0
    %1248 = vmatpush1.msra.mxu0 0.0
    %1249 = vmatprep.subr.mxu0 0.0
    %1250 = vmatpush1.msra.mxu0 0.0
    %1251 = vmatprep.subr.mxu0 0.0
    %1252 = vmatpush1.msra.mxu0 0.0
    %1253 = vmatprep.subr.mxu0 0.0
    %1254 = vmatpush1.msra.mxu0 0.0
    %1255 = vmatprep.subr.mxu0 0.0
    %1256 = vmatpush1.msra.mxu0 0.0
    %1257 = vmatprep.subr.mxu0 0.0
    %1258 = vmatpush1.msra.mxu0 0.0
    %1259 = vmatprep.subr.mxu0 0.0
    %1260 = vmatpush1.msra.mxu0 0.0
    %1261 = vmatprep.subr.mxu0 0.0
    %1262 = vmatpush1.msra.mxu0 0.0
    %1263 = vmatprep.subr.mxu0 0.0
    %1264 = vmatpush1.msra.mxu0 0.0
    %1265 = vmatprep.subr.mxu0 0.0
    %1266 = vmatpush1.msra.mxu0 0.0
    %1267 = vmatprep.subr.mxu0 0.0
    %1268 = vmatpush1.msra.mxu0 0.0
    %1269 = vmatprep.subr.mxu0 0.0
    %1270 = vmatpush1.msra.mxu0 0.0
    %1271 = vmatprep.subr.mxu0 0.0
    %1272 = vmatpush1.msra.mxu0 0.0
    %1273 = vmatprep.subr.mxu0 0.0
    %1274 = vmatpush1.msra.mxu0 0.0
    %1275 = vmatprep.mubr.f32.mxu0 0.0
    %1276 = vmatmul.mubr.f32.gmra.mrb[0].mxu0 %v1209
    %v1277 = vpop.f32.mrb[0].mxu0
    %v1278 = vadd.f32 0.0, %v1277
    %v1279 = vpop.f32.mrb[0].mxu0
    %v1280 = vadd.f32 0.0, %v1279
    %1281 = vdwg.mxu0
    %1282 = vmatprep.subr.mxu0 %v416
    %1283 = vmatpush1.msra.mxu0 %v415
    %1284 = vmatprep.subr.mxu0 %v420
    %1285 = vmatpush1.msra.mxu0 %v419
    %1286 = vmatprep.subr.mxu0 %v424
    %1287 = vmatpush1.msra.mxu0 %v423
    %1288 = vmatprep.subr.mxu0 %v428
    %1289 = vmatpush1.msra.mxu0 %v427
    %1290 = vmatprep.subr.mxu0 %v432
    %1291 = vmatpush1.msra.mxu0 %v431
    %1292 = vmatprep.subr.mxu0 %v436
    %1293 = vmatpush1.msra.mxu0 %v435
    %1294 = vmatprep.subr.mxu0 %v440
    %1295 = vmatpush1.msra.mxu0 %v439
    %1296 = vmatprep.subr.mxu0 %v444
    %1297 = vmatpush1.msra.mxu0 %v443
    %1298 = vmatprep.subr.mxu0 %v448
    %1299 = vmatpush1.msra.mxu0 %v447
    %1300 = vmatprep.subr.mxu0 %v452
    %1301 = vmatpush1.msra.mxu0 %v451
    %1302 = vmatprep.subr.mxu0 %v456
    %1303 = vmatpush1.msra.mxu0 %v455
    %1304 = vmatprep.subr.mxu0 %v460
    %1305 = vmatpush1.msra.mxu0 %v459
    %1306 = vmatprep.subr.mxu0 %v464
    %1307 = vmatpush1.msra.mxu0 %v463
    %1308 = vmatprep.subr.mxu0 %v468
    %1309 = vmatpush1.msra.mxu0 %v467
    %1310 = vmatprep.subr.mxu0 %v472
    %1311 = vmatpush1.msra.mxu0 %v471
    %1312 = vmatprep.subr.mxu0 %v476
    %1313 = vmatpush1.msra.mxu0 %v475
    %1314 = vmatprep.subr.mxu0 0.0
    %1315 = vmatpush1.msra.mxu0 0.0
    %1316 = vmatprep.subr.mxu0 0.0
    %1317 = vmatpush1.msra.mxu0 0.0
    %1318 = vmatprep.subr.mxu0 0.0
    %1319 = vmatpush1.msra.mxu0 0.0
    %1320 = vmatprep.subr.mxu0 0.0
    %1321 = vmatpush1.msra.mxu0 0.0
    %1322 = vmatprep.subr.mxu0 0.0
    %1323 = vmatpush1.msra.mxu0 0.0
    %1324 = vmatprep.subr.mxu0 0.0
    %1325 = vmatpush1.msra.mxu0 0.0
    %1326 = vmatprep.subr.mxu0 0.0
    %1327 = vmatpush1.msra.mxu0 0.0
    %1328 = vmatprep.subr.mxu0 0.0
    %1329 = vmatpush1.msra.mxu0 0.0
    %1330 = vmatprep.subr.mxu0 0.0
    %1331 = vmatpush1.msra.mxu0 0.0
    %1332 = vmatprep.subr.mxu0 0.0
    %1333 = vmatpush1.msra.mxu0 0.0
    %1334 = vmatprep.subr.mxu0 0.0
    %1335 = vmatpush1.msra.mxu0 0.0
    %1336 = vmatprep.subr.mxu0 0.0
    %1337 = vmatpush1.msra.mxu0 0.0
    %1338 = vmatprep.subr.mxu0 0.0
    %1339 = vmatpush1.msra.mxu0 0.0
    %1340 = vmatprep.subr.mxu0 0.0
    %1341 = vmatpush1.msra.mxu0 0.0
    %1342 = vmatprep.subr.mxu0 0.0
    %1343 = vmatpush1.msra.mxu0 0.0
    %1344 = vmatprep.subr.mxu0 0.0
    %1345 = vmatpush1.msra.mxu0 0.0
    %1346 = vmatprep.mubr.f32.mxu0 0.0
    %1347 = vmatmul.mubr.f32.gmra.mrb[0].mxu0 %v1209
    %v1348 = vpop.f32.mrb[0].mxu0
    %v1349 = vadd.f32 0.0, %v1348
    %v1350 = vpop.f32.mrb[0].mxu0
    %v1351 = vadd.f32 0.0, %v1350
    %1352 = vdwg.mxu0
    %v1357 = vrot.slane %v1278, 4
    %v1358 = vrot.slane %v1280, 4
    %v1359 = vrot.slane %v1349, 4
    %v1360 = vrot.slane %v1351, 4
    %v1365 = vadd.f32 %v338, %v1357
    %v1366 = vadd.f32 %v340, %v1358
    %v1367 = vadd.f32 %v409, %v1359
    %v1368 = vadd.f32 %v411, %v1360
    %v1369 = vxor.u32 %v1365, 2147483648
    %v1370 = vmul.f32 %v1369, 1.442695
    %v1371 = vpow.pop %v1370
    %v1372 = vadd.f32 %v1371, 1.0
    %v1373 = vrcp.pop %v1372
    %v1374 = vmul.f32 1.0, %v1373
    %v1375 = vxor.u32 %v1366, 2147483648
    %v1376 = vmul.f32 %v1375, 1.442695
    %v1377 = vpow.pop %v1376
    %v1378 = vadd.f32 %v1377, 1.0
    %v1379 = vrcp.pop %v1378
    %v1380 = vmul.f32 1.0, %v1379
    %v1381 = vtanh.pop %v1367
    %v1382 = vxor.u32 %v1368, 2147483648
    %v1383 = vmul.f32 %v1382, 1.442695
    %v1384 = vpow.pop %v1383
    %v1385 = vadd.f32 %v1384, 1.0
    %v1386 = vrcp.pop %v1385
    %v1387 = vmul.f32 1.0, %v1386
    %v1389 = vrot.slane %v1205, 7
    %v1391 = vmul.f32 %v1380, %v1389
    %v1392 = vmul.f32 %v1374, %v1381
    %v1393 = vadd.f32 %v1391, %v1392
    %v1394 = vtanh.pop %v1393
    %v1395 = vmul.f32 %v1387, %v1394
    %v1397 = vrot.slane %v1395, 4
    %1399 = vmatprep.subr.mxu0 %v414
    %1400 = vmatpush1.msra.mxu0 %v413
    %1401 = vmatprep.subr.mxu0 %v418
    %1402 = vmatpush1.msra.mxu0 %v417
    %1403 = vmatprep.subr.mxu0 %v422
    %1404 = vmatpush1.msra.mxu0 %v421
    %1405 = vmatprep.subr.mxu0 %v426
    %1406 = vmatpush1.msra.mxu0 %v425
    %1407 = vmatprep.subr.mxu0 %v430
    %1408 = vmatpush1.msra.mxu0 %v429
    %1409 = vmatprep.subr.mxu0 %v434
    %1410 = vmatpush1.msra.mxu0 %v433
    %1411 = vmatprep.subr.mxu0 %v438
    %1412 = vmatpush1.msra.mxu0 %v437
    %1413 = vmatprep.subr.mxu0 %v442
    %1414 = vmatpush1.msra.mxu0 %v441
    %1415 = vmatprep.subr.mxu0 %v446
    %1416 = vmatpush1.msra.mxu0 %v445
    %1417 = vmatprep.subr.mxu0 %v450
    %1418 = vmatpush1.msra.mxu0 %v449
    %1419 = vmatprep.subr.mxu0 %v454
    %1420 = vmatpush1.msra.mxu0 %v453
    %1421 = vmatprep.subr.mxu0 %v458
    %1422 = vmatpush1.msra.mxu0 %v457
    %1423 = vmatprep.subr.mxu0 %v462
    %1424 = vmatpush1.msra.mxu0 %v461
    %1425 = vmatprep.subr.mxu0 %v466
    %1426 = vmatpush1.msra.mxu0 %v465
    %1427 = vmatprep.subr.mxu0 %v470
    %1428 = vmatpush1.msra.mxu0 %v469
    %1429 = vmatprep.subr.mxu0 %v474
    %1430 = vmatpush1.msra.mxu0 %v473
    %1431 = vmatprep.subr.mxu0 0.0
    %1432 = vmatpush1.msra.mxu0 0.0
    %1433 = vmatprep.subr.mxu0 0.0
    %1434 = vmatpush1.msra.mxu0 0.0
    %1435 = vmatprep.subr.mxu0 0.0
    %1436 = vmatpush1.msra.mxu0 0.0
    %1437 = vmatprep.subr.mxu0 0.0
    %1438 = vmatpush1.msra.mxu0 0.0
    %1439 = vmatprep.subr.mxu0 0.0
    %1440 = vmatpush1.msra.mxu0 0.0
    %1441 = vmatprep.subr.mxu0 0.0
    %1442 = vmatpush1.msra.mxu0 0.0
    %1443 = vmatprep.subr.mxu0 0.0
    %1444 = vmatpush1.msra.mxu0 0.0
    %1445 = vmatprep.subr.mxu0 0.0
    %1446 = vmatpush1.msra.mxu0 0.0
    %1447 = vmatprep.subr.mxu0 0.0
    %1448 = vmatpush1.msra.mxu0 0.0
    %1449 = vmatprep.subr.mxu0 0.0
    %1450 = vmatpush1.msra.mxu0 0.0
    %1451 = vmatprep.subr.mxu0 0.0
    %1452 = vmatpush1.msra.mxu0 0.0
    %1453 = vmatprep.subr.mxu0 0.0
    %1454 = vmatpush1.msra.mxu0 0.0
    %1455 = vmatprep.subr.mxu0 0.0
    %1456 = vmatpush1.msra.mxu0 0.0
    %1457 = vmatprep.subr.mxu0 0.0
    %1458 = vmatpush1.msra.mxu0 0.0
    %1459 = vmatprep.subr.mxu0 0.0
    %1460 = vmatpush1.msra.mxu0 0.0
    %1461 = vmatprep.subr.mxu0 0.0
    %1462 = vmatpush1.msra.mxu0 0.0
    %1463 = vmatprep.mubr.f32.mxu0 0.0
    %1464 = vmatmul.mubr.f32.gmra.mrb[0].mxu0 %v1397
    %v1465 = vpop.f32.mrb[0].mxu0
    %v1466 = vadd.f32 0.0, %v1465
    %v1467 = vpop.f32.mrb[0].mxu0
    %v1468 = vadd.f32 0.0, %v1467
    %1469 = vdwg.mxu0
    %1470 = vmatprep.subr.mxu0 %v416
    %1471 = vmatpush1.msra.mxu0 %v415
    %1472 = vmatprep.subr.mxu0 %v420
    %1473 = vmatpush1.msra.mxu0 %v419
    %1474 = vmatprep.subr.mxu0 %v424
    %1475 = vmatpush1.msra.mxu0 %v423
    %1476 = vmatprep.subr.mxu0 %v428
    %1477 = vmatpush1.msra.mxu0 %v427
    %1478 = vmatprep.subr.mxu0 %v432
    %1479 = vmatpush1.msra.mxu0 %v431
    %1480 = vmatprep.subr.mxu0 %v436
    %1481 = vmatpush1.msra.mxu0 %v435
    %1482 = vmatprep.subr.mxu0 %v440
    %1483 = vmatpush1.msra.mxu0 %v439
    %1484 = vmatprep.subr.mxu0 %v444
    %1485 = vmatpush1.msra.mxu0 %v443
    %1486 = vmatprep.subr.mxu0 %v448
    %1487 = vmatpush1.msra.mxu0 %v447
    %1488 = vmatprep.subr.mxu0 %v452
    %1489 = vmatpush1.msra.mxu0 %v451
    %1490 = vmatprep.subr.mxu0 %v456
    %1491 = vmatpush1.msra.mxu0 %v455
    %1492 = vmatprep.subr.mxu0 %v460
    %1493 = vmatpush1.msra.mxu0 %v459
    %1494 = vmatprep.subr.mxu0 %v464
    %1495 = vmatpush1.msra.mxu0 %v463
    %1496 = vmatprep.subr.mxu0 %v468
    %1497 = vmatpush1.msra.mxu0 %v467
    %1498 = vmatprep.subr.mxu0 %v472
    %1499 = vmatpush1.msra.mxu0 %v471
    %1500 = vmatprep.subr.mxu0 %v476
    %1501 = vmatpush1.msra.mxu0 %v475
    %1502 = vmatprep.subr.mxu0 0.0
    %1503 = vmatpush1.msra.mxu0 0.0
    %1504 = vmatprep.subr.mxu0 0.0
    %1505 = vmatpush1.msra.mxu0 0.0
    %1506 = vmatprep.subr.mxu0 0.0
    %1507 = vmatpush1.msra.mxu0 0.0
    %1508 = vmatprep.subr.mxu0 0.0
    %1509 = vmatpush1.msra.mxu0 0.0
    %1510 = vmatprep.subr.mxu0 0.0
    %1511 = vmatpush1.msra.mxu0 0.0
    %1512 = vmatprep.subr.mxu0 0.0
    %1513 = vmatpush1.msra.mxu0 0.0
    %1514 = vmatprep.subr.mxu0 0.0
    %1515 = vmatpush1.msra.mxu0 0.0
    %1516 = vmatprep.subr.mxu0 0.0
    %1517 = vmatpush1.msra.mxu0 0.0
    %1518 = vmatprep.subr.mxu0 0.0
    %1519 = vmatpush1.msra.mxu0 0.0
    %1520 = vmatprep.subr.mxu0 0.0
    %1521 = vmatpush1.msra.mxu0 0.0
    %1522 = vmatprep.subr.mxu0 0.0
    %1523 = vmatpush1.msra.mxu0 0.0
    %1524 = vmatprep.subr.mxu0 0.0
    %1525 = vmatpush1.msra.mxu0 0.0
    %1526 = vmatprep.subr.mxu0 0.0
    %1527 = vmatpush1.msra.mxu0 0.0
    %1528 = vmatprep.subr.mxu0 0.0
    %1529 = vmatpush1.msra.mxu0 0.0
    %1530 = vmatprep.subr.mxu0 0.0
    %1531 = vmatpush1.msra.mxu0 0.0
    %1532 = vmatprep.subr.mxu0 0.0
    %1533 = vmatpush1.msra.mxu0 0.0
    %1534 = vmatprep.mubr.f32.mxu0 0.0
    %1535 = vmatmul.mubr.f32.gmra.mrb[0].mxu0 %v1397
    %v1536 = vpop.f32.mrb[0].mxu0
    %v1537 = vadd.f32 0.0, %v1536
    %v1538 = vpop.f32.mrb[0].mxu0
    %v1539 = vadd.f32 0.0, %v1538
    %1540 = vdwg.mxu0
    %v1545 = vrot.slane %v1466, 3
    %v1546 = vrot.slane %v1468, 3
    %v1547 = vrot.slane %v1537, 3
    %v1548 = vrot.slane %v1539, 3
    %v1553 = vadd.f32 %v338, %v1545
    %v1554 = vadd.f32 %v340, %v1546
    %v1555 = vadd.f32 %v409, %v1547
    %v1556 = vadd.f32 %v411, %v1548
    %v1557 = vxor.u32 %v1553, 2147483648
    %v1558 = vmul.f32 %v1557, 1.442695
    %v1559 = vpow.pop %v1558
    %v1560 = vadd.f32 %v1559, 1.0
    %v1561 = vrcp.pop %v1560
    %v1562 = vmul.f32 1.0, %v1561
    %v1563 = vxor.u32 %v1554, 2147483648
    %v1564 = vmul.f32 %v1563, 1.442695
    %v1565 = vpow.pop %v1564
    %v1566 = vadd.f32 %v1565, 1.0
    %v1567 = vrcp.pop %v1566
    %v1568 = vmul.f32 1.0, %v1567
    %v1569 = vtanh.pop %v1555
    %v1570 = vxor.u32 %v1556, 2147483648
    %v1571 = vmul.f32 %v1570, 1.442695
    %v1572 = vpow.pop %v1571
    %v1573 = vadd.f32 %v1572, 1.0
    %v1574 = vrcp.pop %v1573
    %v1575 = vmul.f32 1.0, %v1574
    %v1577 = vrot.slane %v1393, 7
    %v1579 = vmul.f32 %v1568, %v1577
    %v1580 = vmul.f32 %v1562, %v1569
    %v1581 = vadd.f32 %v1579, %v1580
    %v1582 = vtanh.pop %v1581
    %v1583 = vmul.f32 %v1575, %v1582
    %v1585 = vrot.slane %v1583, 5
    %1587 = vmatprep.subr.mxu0 %v414
    %1588 = vmatpush1.msra.mxu0 %v413
    %1589 = vmatprep.subr.mxu0 %v418
    %1590 = vmatpush1.msra.mxu0 %v417
    %1591 = vmatprep.subr.mxu0 %v422
    %1592 = vmatpush1.msra.mxu0 %v421
    %1593 = vmatprep.subr.mxu0 %v426
    %1594 = vmatpush1.msra.mxu0 %v425
    %1595 = vmatprep.subr.mxu0 %v430
    %1596 = vmatpush1.msra.mxu0 %v429
    %1597 = vmatprep.subr.mxu0 %v434
    %1598 = vmatpush1.msra.mxu0 %v433
    %1599 = vmatprep.subr.mxu0 %v438
    %1600 = vmatpush1.msra.mxu0 %v437
    %1601 = vmatprep.subr.mxu0 %v442
    %1602 = vmatpush1.msra.mxu0 %v441
    %1603 = vmatprep.subr.mxu0 %v446
    %1604 = vmatpush1.msra.mxu0 %v445
    %1605 = vmatprep.subr.mxu0 %v450
    %1606 = vmatpush1.msra.mxu0 %v449
    %1607 = vmatprep.subr.mxu0 %v454
    %1608 = vmatpush1.msra.mxu0 %v453
    %1609 = vmatprep.subr.mxu0 %v458
    %1610 = vmatpush1.msra.mxu0 %v457
    %1611 = vmatprep.subr.mxu0 %v462
    %1612 = vmatpush1.msra.mxu0 %v461
    %1613 = vmatprep.subr.mxu0 %v466
    %1614 = vmatpush1.msra.mxu0 %v465
    %1615 = vmatprep.subr.mxu0 %v470
    %1616 = vmatpush1.msra.mxu0 %v469
    %1617 = vmatprep.subr.mxu0 %v474
    %1618 = vmatpush1.msra.mxu0 %v473
    %1619 = vmatprep.subr.mxu0 0.0
    %1620 = vmatpush1.msra.mxu0 0.0
    %1621 = vmatprep.subr.mxu0 0.0
    %1622 = vmatpush1.msra.mxu0 0.0
    %1623 = vmatprep.subr.mxu0 0.0
    %1624 = vmatpush1.msra.mxu0 0.0
    %1625 = vmatprep.subr.mxu0 0.0
    %1626 = vmatpush1.msra.mxu0 0.0
    %1627 = vmatprep.subr.mxu0 0.0
    %1628 = vmatpush1.msra.mxu0 0.0
    %1629 = vmatprep.subr.mxu0 0.0
    %1630 = vmatpush1.msra.mxu0 0.0
    %1631 = vmatprep.subr.mxu0 0.0
    %1632 = vmatpush1.msra.mxu0 0.0
    %1633 = vmatprep.subr.mxu0 0.0
    %1634 = vmatpush1.msra.mxu0 0.0
    %1635 = vmatprep.subr.mxu0 0.0
    %1636 = vmatpush1.msra.mxu0 0.0
    %1637 = vmatprep.subr.mxu0 0.0
    %1638 = vmatpush1.msra.mxu0 0.0
    %1639 = vmatprep.subr.mxu0 0.0
    %1640 = vmatpush1.msra.mxu0 0.0
    %1641 = vmatprep.subr.mxu0 0.0
    %1642 = vmatpush1.msra.mxu0 0.0
    %1643 = vmatprep.subr.mxu0 0.0
    %1644 = vmatpush1.msra.mxu0 0.0
    %1645 = vmatprep.subr.mxu0 0.0
    %1646 = vmatpush1.msra.mxu0 0.0
    %1647 = vmatprep.subr.mxu0 0.0
    %1648 = vmatpush1.msra.mxu0 0.0
    %1649 = vmatprep.subr.mxu0 0.0
    %1650 = vmatpush1.msra.mxu0 0.0
    %1651 = vmatprep.mubr.f32.mxu0 0.0
    %1652 = vmatmul.mubr.f32.gmra.mrb[0].mxu0 %v1585
    %v1653 = vpop.f32.mrb[0].mxu0
    %v1654 = vadd.f32 0.0, %v1653
    %v1655 = vpop.f32.mrb[0].mxu0
    %v1656 = vadd.f32 0.0, %v1655
    %1657 = vdwg.mxu0
    %1658 = vmatprep.subr.mxu0 %v416
    %1659 = vmatpush1.msra.mxu0 %v415
    %1660 = vmatprep.subr.mxu0 %v420
    %1661 = vmatpush1.msra.mxu0 %v419
    %1662 = vmatprep.subr.mxu0 %v424
    %1663 = vmatpush1.msra.mxu0 %v423
    %1664 = vmatprep.subr.mxu0 %v428
    %1665 = vmatpush1.msra.mxu0 %v427
    %1666 = vmatprep.subr.mxu0 %v432
    %1667 = vmatpush1.msra.mxu0 %v431
    %1668 = vmatprep.subr.mxu0 %v436
    %1669 = vmatpush1.msra.mxu0 %v435
    %1670 = vmatprep.subr.mxu0 %v440
    %1671 = vmatpush1.msra.mxu0 %v439
    %1672 = vmatprep.subr.mxu0 %v444
    %1673 = vmatpush1.msra.mxu0 %v443
    %1674 = vmatprep.subr.mxu0 %v448
    %1675 = vmatpush1.msra.mxu0 %v447
    %1676 = vmatprep.subr.mxu0 %v452
    %1677 = vmatpush1.msra.mxu0 %v451
    %1678 = vmatprep.subr.mxu0 %v456
    %1679 = vmatpush1.msra.mxu0 %v455
    %1680 = vmatprep.subr.mxu0 %v460
    %1681 = vmatpush1.msra.mxu0 %v459
    %1682 = vmatprep.subr.mxu0 %v464
    %1683 = vmatpush1.msra.mxu0 %v463
    %1684 = vmatprep.subr.mxu0 %v468
    %1685 = vmatpush1.msra.mxu0 %v467
    %1686 = vmatprep.subr.mxu0 %v472
    %1687 = vmatpush1.msra.mxu0 %v471
    %1688 = vmatprep.subr.mxu0 %v476
    %1689 = vmatpush1.msra.mxu0 %v475
    %1690 = vmatprep.subr.mxu0 0.0
    %1691 = vmatpush1.msra.mxu0 0.0
    %1692 = vmatprep.subr.mxu0 0.0
    %1693 = vmatpush1.msra.mxu0 0.0
    %1694 = vmatprep.subr.mxu0 0.0
    %1695 = vmatpush1.msra.mxu0 0.0
    %1696 = vmatprep.subr.mxu0 0.0
    %1697 = vmatpush1.msra.mxu0 0.0
    %1698 = vmatprep.subr.mxu0 0.0
    %1699 = vmatpush1.msra.mxu0 0.0
    %1700 = vmatprep.subr.mxu0 0.0
    %1701 = vmatpush1.msra.mxu0 0.0
    %1702 = vmatprep.subr.mxu0 0.0
    %1703 = vmatpush1.msra.mxu0 0.0
    %1704 = vmatprep.subr.mxu0 0.0
    %1705 = vmatpush1.msra.mxu0 0.0
    %1706 = vmatprep.subr.mxu0 0.0
    %1707 = vmatpush1.msra.mxu0 0.0
    %1708 = vmatprep.subr.mxu0 0.0
    %1709 = vmatpush1.msra.mxu0 0.0
    %1710 = vmatprep.subr.mxu0 0.0
    %1711 = vmatpush1.msra.mxu0 0.0
    %1712 = vmatprep.subr.mxu0 0.0
    %1713 = vmatpush1.msra.mxu0 0.0
    %1714 = vmatprep.subr.mxu0 0.0
    %1715 = vmatpush1.msra.mxu0 0.0
    %1716 = vmatprep.subr.mxu0 0.0
    %1717 = vmatpush1.msra.mxu0 0.0
    %1718 = vmatprep.subr.mxu0 0.0
    %1719 = vmatpush1.msra.mxu0 0.0
    %1720 = vmatprep.subr.mxu0 0.0
    %1721 = vmatpush1.msra.mxu0 0.0
    %1722 = vmatprep.mubr.f32.mxu0 0.0
    %1723 = vmatmul.mubr.f32.gmra.mrb[0].mxu0 %v1585
    %v1724 = vpop.f32.mrb[0].mxu0
    %v1725 = vadd.f32 0.0, %v1724
    %v1726 = vpop.f32.mrb[0].mxu0
    %v1727 = vadd.f32 0.0, %v1726
    %1728 = vdwg.mxu0
    %v1733 = vrot.slane %v1654, 2
    %v1734 = vrot.slane %v1656, 2
    %v1735 = vrot.slane %v1725, 2
    %v1736 = vrot.slane %v1727, 2
    %v1741 = vadd.f32 %v338, %v1733
    %v1742 = vadd.f32 %v340, %v1734
    %v1743 = vadd.f32 %v409, %v1735
    %v1744 = vadd.f32 %v411, %v1736
    %v1745 = vxor.u32 %v1741, 2147483648
    %v1746 = vmul.f32 %v1745, 1.442695
    %v1747 = vpow.pop %v1746
    %v1748 = vadd.f32 %v1747, 1.0
    %v1749 = vrcp.pop %v1748
    %v1750 = vmul.f32 1.0, %v1749
    %v1751 = vxor.u32 %v1742, 2147483648
    %v1752 = vmul.f32 %v1751, 1.442695
    %v1753 = vpow.pop %v1752
    %v1754 = vadd.f32 %v1753, 1.0
    %v1755 = vrcp.pop %v1754
    %v1756 = vmul.f32 1.0, %v1755
    %v1757 = vtanh.pop %v1743
    %v1758 = vxor.u32 %v1744, 2147483648
    %v1759 = vmul.f32 %v1758, 1.442695
    %v1760 = vpow.pop %v1759
    %v1761 = vadd.f32 %v1760, 1.0
    %v1762 = vrcp.pop %v1761
    %v1763 = vmul.f32 1.0, %v1762
    %v1765 = vrot.slane %v1581, 7
    %v1767 = vmul.f32 %v1756, %v1765
    %v1768 = vmul.f32 %v1750, %v1757
    %v1769 = vadd.f32 %v1767, %v1768
    %v1770 = vtanh.pop %v1769
    %v1771 = vmul.f32 %v1763, %v1770
    %v1773 = vrot.slane %v1771, 6
    %1775 = vmatprep.subr.mxu0 %v414
    %1776 = vmatpush1.msra.mxu0 %v413
    %1777 = vmatprep.subr.mxu0 %v418
    %1778 = vmatpush1.msra.mxu0 %v417
    %1779 = vmatprep.subr.mxu0 %v422
    %1780 = vmatpush1.msra.mxu0 %v421
    %1781 = vmatprep.subr.mxu0 %v426
    %1782 = vmatpush1.msra.mxu0 %v425
    %1783 = vmatprep.subr.mxu0 %v430
    %1784 = vmatpush1.msra.mxu0 %v429
    %1785 = vmatprep.subr.mxu0 %v434
    %1786 = vmatpush1.msra.mxu0 %v433
    %1787 = vmatprep.subr.mxu0 %v438
    %1788 = vmatpush1.msra.mxu0 %v437
    %1789 = vmatprep.subr.mxu0 %v442
    %1790 = vmatpush1.msra.mxu0 %v441
    %1791 = vmatprep.subr.mxu0 %v446
    %1792 = vmatpush1.msra.mxu0 %v445
    %1793 = vmatprep.subr.mxu0 %v450
    %1794 = vmatpush1.msra.mxu0 %v449
    %1795 = vmatprep.subr.mxu0 %v454
    %1796 = vmatpush1.msra.mxu0 %v453
    %1797 = vmatprep.subr.mxu0 %v458
    %1798 = vmatpush1.msra.mxu0 %v457
    %1799 = vmatprep.subr.mxu0 %v462
    %1800 = vmatpush1.msra.mxu0 %v461
    %1801 = vmatprep.subr.mxu0 %v466
    %1802 = vmatpush1.msra.mxu0 %v465
    %1803 = vmatprep.subr.mxu0 %v470
    %1804 = vmatpush1.msra.mxu0 %v469
    %1805 = vmatprep.subr.mxu0 %v474
    %1806 = vmatpush1.msra.mxu0 %v473
    %1807 = vmatprep.subr.mxu0 0.0
    %1808 = vmatpush1.msra.mxu0 0.0
    %1809 = vmatprep.subr.mxu0 0.0
    %1810 = vmatpush1.msra.mxu0 0.0
    %1811 = vmatprep.subr.mxu0 0.0
    %1812 = vmatpush1.msra.mxu0 0.0
    %1813 = vmatprep.subr.mxu0 0.0
    %1814 = vmatpush1.msra.mxu0 0.0
    %1815 = vmatprep.subr.mxu0 0.0
    %1816 = vmatpush1.msra.mxu0 0.0
    %1817 = vmatprep.subr.mxu0 0.0
    %1818 = vmatpush1.msra.mxu0 0.0
    %1819 = vmatprep.subr.mxu0 0.0
    %1820 = vmatpush1.msra.mxu0 0.0
    %1821 = vmatprep.subr.mxu0 0.0
    %1822 = vmatpush1.msra.mxu0 0.0
    %1823 = vmatprep.subr.mxu0 0.0
    %1824 = vmatpush1.msra.mxu0 0.0
    %1825 = vmatprep.subr.mxu0 0.0
    %1826 = vmatpush1.msra.mxu0 0.0
    %1827 = vmatprep.subr.mxu0 0.0
    %1828 = vmatpush1.msra.mxu0 0.0
    %1829 = vmatprep.subr.mxu0 0.0
    %1830 = vmatpush1.msra.mxu0 0.0
    %1831 = vmatprep.subr.mxu0 0.0
    %1832 = vmatpush1.msra.mxu0 0.0
    %1833 = vmatprep.subr.mxu0 0.0
    %1834 = vmatpush1.msra.mxu0 0.0
    %1835 = vmatprep.subr.mxu0 0.0
    %1836 = vmatpush1.msra.mxu0 0.0
    %1837 = vmatprep.subr.mxu0 0.0
    %1838 = vmatpush1.msra.mxu0 0.0
    %1839 = vmatprep.mubr.f32.mxu0 0.0
    %1840 = vmatmul.mubr.f32.gmra.mrb[0].mxu0 %v1773
    %v1841 = vpop.f32.mrb[0].mxu0
    %v1842 = vadd.f32 0.0, %v1841
    %v1843 = vpop.f32.mrb[0].mxu0
    %v1844 = vadd.f32 0.0, %v1843
    %1845 = vdwg.mxu0
    %1846 = vmatprep.subr.mxu0 %v416
    %1847 = vmatpush1.msra.mxu0 %v415
    %1848 = vmatprep.subr.mxu0 %v420
    %1849 = vmatpush1.msra.mxu0 %v419
    %1850 = vmatprep.subr.mxu0 %v424
    %1851 = vmatpush1.msra.mxu0 %v423
    %1852 = vmatprep.subr.mxu0 %v428
    %1853 = vmatpush1.msra.mxu0 %v427
    %1854 = vmatprep.subr.mxu0 %v432
    %1855 = vmatpush1.msra.mxu0 %v431
    %1856 = vmatprep.subr.mxu0 %v436
    %1857 = vmatpush1.msra.mxu0 %v435
    %1858 = vmatprep.subr.mxu0 %v440
    %1859 = vmatpush1.msra.mxu0 %v439
    %1860 = vmatprep.subr.mxu0 %v444
    %1861 = vmatpush1.msra.mxu0 %v443
    %1862 = vmatprep.subr.mxu0 %v448
    %1863 = vmatpush1.msra.mxu0 %v447
    %1864 = vmatprep.subr.mxu0 %v452
    %1865 = vmatpush1.msra.mxu0 %v451
    %1866 = vmatprep.subr.mxu0 %v456
    %1867 = vmatpush1.msra.mxu0 %v455
    %1868 = vmatprep.subr.mxu0 %v460
    %1869 = vmatpush1.msra.mxu0 %v459
    %1870 = vmatprep.subr.mxu0 %v464
    %1871 = vmatpush1.msra.mxu0 %v463
    %1872 = vmatprep.subr.mxu0 %v468
    %1873 = vmatpush1.msra.mxu0 %v467
    %1874 = vmatprep.subr.mxu0 %v472
    %1875 = vmatpush1.msra.mxu0 %v471
    %1876 = vmatprep.subr.mxu0 %v476
    %1877 = vmatpush1.msra.mxu0 %v475
    %1878 = vmatprep.subr.mxu0 0.0
    %1879 = vmatpush1.msra.mxu0 0.0
    %1880 = vmatprep.subr.mxu0 0.0
    %1881 = vmatpush1.msra.mxu0 0.0
    %1882 = vmatprep.subr.mxu0 0.0
    %1883 = vmatpush1.msra.mxu0 0.0
    %1884 = vmatprep.subr.mxu0 0.0
    %1885 = vmatpush1.msra.mxu0 0.0
    %1886 = vmatprep.subr.mxu0 0.0
    %1887 = vmatpush1.msra.mxu0 0.0
    %1888 = vmatprep.subr.mxu0 0.0
    %1889 = vmatpush1.msra.mxu0 0.0
    %1890 = vmatprep.subr.mxu0 0.0
    %1891 = vmatpush1.msra.mxu0 0.0
    %1892 = vmatprep.subr.mxu0 0.0
    %1893 = vmatpush1.msra.mxu0 0.0
    %1894 = vmatprep.subr.mxu0 0.0
    %1895 = vmatpush1.msra.mxu0 0.0
    %1896 = vmatprep.subr.mxu0 0.0
    %1897 = vmatpush1.msra.mxu0 0.0
    %1898 = vmatprep.subr.mxu0 0.0
    %1899 = vmatpush1.msra.mxu0 0.0
    %1900 = vmatprep.subr.mxu0 0.0
    %1901 = vmatpush1.msra.mxu0 0.0
    %1902 = vmatprep.subr.mxu0 0.0
    %1903 = vmatpush1.msra.mxu0 0.0
    %1904 = vmatprep.subr.mxu0 0.0
    %1905 = vmatpush1.msra.mxu0 0.0
    %1906 = vmatprep.subr.mxu0 0.0
    %1907 = vmatpush1.msra.mxu0 0.0
    %1908 = vmatprep.subr.mxu0 0.0
    %1909 = vmatpush1.msra.mxu0 0.0
    %1910 = vmatprep.mubr.f32.mxu0 0.0
    %1911 = vmatmul.mubr.f32.gmra.mrb[0].mxu0 %v1773
    %v1912 = vpop.f32.mrb[0].mxu0
    %v1913 = vadd.f32 0.0, %v1912
    %v1914 = vpop.f32.mrb[0].mxu0
    %v1915 = vadd.f32 0.0, %v1914
    %1916 = vdwg.mxu0
    %v1921 = vrot.slane %v1842, 1
    %v1922 = vrot.slane %v1844, 1
    %v1923 = vrot.slane %v1913, 1
    %v1924 = vrot.slane %v1915, 1
    %v1929 = vadd.f32 %v338, %v1921
    %v1930 = vadd.f32 %v340, %v1922
    %v1931 = vadd.f32 %v409, %v1923
    %v1932 = vadd.f32 %v411, %v1924
    %v1933 = vxor.u32 %v1929, 2147483648
    %v1934 = vmul.f32 %v1933, 1.442695
    %v1935 = vpow.pop %v1934
    %v1936 = vadd.f32 %v1935, 1.0
    %v1937 = vrcp.pop %v1936
    %v1938 = vmul.f32 1.0, %v1937
    %v1939 = vxor.u32 %v1930, 2147483648
    %v1940 = vmul.f32 %v1939, 1.442695
    %v1941 = vpow.pop %v1940
    %v1942 = vadd.f32 %v1941, 1.0
    %v1943 = vrcp.pop %v1942
    %v1944 = vmul.f32 1.0, %v1943
    %v1945 = vtanh.pop %v1931
    %v1946 = vxor.u32 %v1932, 2147483648
    %v1947 = vmul.f32 %v1946, 1.442695
    %v1948 = vpow.pop %v1947
    %v1949 = vadd.f32 %v1948, 1.0
    %v1950 = vrcp.pop %v1949
    %v1951 = vmul.f32 1.0, %v1950
    %v1953 = vrot.slane %v1769, 7
    %v1955 = vmul.f32 %v1944, %v1953
    %v1956 = vmul.f32 %v1938, %v1945
    %v1957 = vadd.f32 %v1955, %v1956
    %v1958 = vtanh.pop %v1957
    %v1959 = vmul.f32 %v1951, %v1958
    %1960 = vst [vmem:[#allocation12 - $0x7] sm:$0x80] %v1959
    %1961 = vst [vmem:[#allocation14 - $0x7] sm:$0x80] %v1957
    %vm1962 = vcmask 1040384
    %v1963 = vsel %vm1962, %v646, %v831
    %vm1964 = vcmask 1041408
    %v1965 = vsel %vm1964, %v1963, %v1019
    %vm1966 = vcmask 1042432
    %v1967 = vsel %vm1966, %v1965, %v1207
    %vm1968 = vcmask 1043456
    %v1969 = vsel %vm1968, %v1967, %v1395
    %vm1970 = vcmask 1044480
    %v1971 = vsel %vm1970, %v1969, %v1583
    %vm1972 = vcmask 1045504
    %v1973 = vsel %vm1972, %v1971, %v1771
    %vm1974 = vcmask 1046528
    %v1975 = vsel %vm1974, %v1973, %v1959
    %v1976 = vld [vmem:[#allocation10] sm:$0xff]
    %v1977 = vld [vmem:[#allocation10 + $0x8] sm:$0xff]
    %v1978 = vld [vmem:[#allocation10 + $0x10] sm:$0xff]
    %v1979 = vld [vmem:[#allocation10 + $0x18] sm:$0xff]
    %v1980 = vld [vmem:[#allocation10 + $0x20] sm:$0xff]
    %v1981 = vld [vmem:[#allocation10 + $0x28] sm:$0xff]
    %v1982 = vld [vmem:[#allocation10 + $0x30] sm:$0xff]
    %v1983 = vld [vmem:[#allocation10 + $0x38] sm:$0xff]
    %v1984 = vld [vmem:[#allocation10 + $0x40] sm:$0xff]
    %v1985 = vld [vmem:[#allocation10 + $0x48] sm:$0xff]
    %v1986 = vld [vmem:[#allocation10 + $0x50] sm:$0xff]
    %v1987 = vld [vmem:[#allocation10 + $0x58] sm:$0xff]
    %v1988 = vld [vmem:[#allocation10 + $0x60] sm:$0xff]
    %v1989 = vld [vmem:[#allocation10 + $0x68] sm:$0xff]
    %v1990 = vld [vmem:[#allocation10 + $0x70] sm:$0xff]
    %v1991 = vld [vmem:[#allocation10 + $0x78] sm:$0xff]
    %v1992 = vld [vmem:[%s7] sm:$0x1]
    %v1994 = vlaneseq
    %v1995 = vshrl.u32 %v1994, 7
    %v1996 = vsub.s32 0, %v1995
    %v1997 = vrot.slane %v1992, %v1996
    %1999 = vmatprep.subr.mxu0 0.0
    %2000 = vmatpush1.msra.mxu0 %v1976
    %2001 = vmatprep.subr.mxu0 0.0
    %2002 = vmatpush1.msra.mxu0 %v1977
    %2003 = vmatprep.subr.mxu0 0.0
    %2004 = vmatpush1.msra.mxu0 %v1978
    %2005 = vmatprep.subr.mxu0 0.0
    %2006 = vmatpush1.msra.mxu0 %v1979
    %2007 = vmatprep.subr.mxu0 0.0
    %2008 = vmatpush1.msra.mxu0 %v1980
    %2009 = vmatprep.subr.mxu0 0.0
    %2010 = vmatpush1.msra.mxu0 %v1981
    %2011 = vmatprep.subr.mxu0 0.0
    %2012 = vmatpush1.msra.mxu0 %v1982
    %2013 = vmatprep.subr.mxu0 0.0
    %2014 = vmatpush1.msra.mxu0 %v1983
    %2015 = vmatprep.subr.mxu0 0.0
    %2016 = vmatpush1.msra.mxu0 %v1984
    %2017 = vmatprep.subr.mxu0 0.0
    %2018 = vmatpush1.msra.mxu0 %v1985
    %2019 = vmatprep.subr.mxu0 0.0
    %2020 = vmatpush1.msra.mxu0 %v1986
    %2021 = vmatprep.subr.mxu0 0.0
    %2022 = vmatpush1.msra.mxu0 %v1987
    %2023 = vmatprep.subr.mxu0 0.0
    %2024 = vmatpush1.msra.mxu0 %v1988
    %2025 = vmatprep.subr.mxu0 0.0
    %2026 = vmatpush1.msra.mxu0 %v1989
    %2027 = vmatprep.subr.mxu0 0.0
    %2028 = vmatpush1.msra.mxu0 %v1990
    %2029 = vmatprep.subr.mxu0 0.0
    %2030 = vmatpush1.msra.mxu0 %v1991
    %2031 = vmatprep.subr.mxu0 0.0
    %2032 = vmatpush1.msra.mxu0 0.0
    %2033 = vmatprep.subr.mxu0 0.0
    %2034 = vmatpush1.msra.mxu0 0.0
    %2035 = vmatprep.subr.mxu0 0.0
    %2036 = vmatpush1.msra.mxu0 0.0
    %2037 = vmatprep.subr.mxu0 0.0
    %2038 = vmatpush1.msra.mxu0 0.0
    %2039 = vmatprep.subr.mxu0 0.0
    %2040 = vmatpush1.msra.mxu0 0.0
    %2041 = vmatprep.subr.mxu0 0.0
    %2042 = vmatpush1.msra.mxu0 0.0
    %2043 = vmatprep.subr.mxu0 0.0
    %2044 = vmatpush1.msra.mxu0 0.0
    %2045 = vmatprep.subr.mxu0 0.0
    %2046 = vmatpush1.msra.mxu0 0.0
    %2047 = vmatprep.subr.mxu0 0.0
    %2048 = vmatpush1.msra.mxu0 0.0
    %2049 = vmatprep.subr.mxu0 0.0
    %2050 = vmatpush1.msra.mxu0 0.0
    %2051 = vmatprep.subr.mxu0 0.0
    %2052 = vmatpush1.msra.mxu0 0.0
    %2053 = vmatprep.subr.mxu0 0.0
    %2054 = vmatpush1.msra.mxu0 0.0
    %2055 = vmatprep.subr.mxu0 0.0
    %2056 = vmatpush1.msra.mxu0 0.0
    %2057 = vmatprep.subr.mxu0 0.0
    %2058 = vmatpush1.msra.mxu0 0.0
    %2059 = vmatprep.subr.mxu0 0.0
    %2060 = vmatpush1.msra.mxu0 0.0
    %2061 = vmatprep.subr.mxu0 0.0
    %2062 = vmatpush1.msra.mxu0 0.0
    %2063 = vmatprep.mubr.f32.mxu0 0.0
    %2064 = vmatmul.mubr.f32.gmra.mrb[0].mxu0 %v1975
    %v2065 = vpop.f32.mrb[0].mxu0
    %v2066 = vadd.f32 %v1997, %v2065
    %v2067 = vpop.f32.mrb[0].mxu0
    %2068 = vdwg.mxu0
    %2069 = vst [vmem:[#allocation11] sm:$0xff] %v2066
    // Predicated region
    $region54: #{tpu_custom_call.1} parent=1 // pred_check
      _
    $region55: #{tpu_custom_call.1} parent=1 // pred_check_branch
      %2071 = sbr.rel (0) target = $region57
    $region56: #{tpu_custom_call.1} parent=1 // pred_region
      %s2073 = ssub.s32 128, 128
      %2074 = vsyncadd [#allocation4], %s2073
      %s2076 = sshll.u32 [#allocation11], 4
      %s2077 = int_to_ptr.vmem [resolvable:$true] %s2076
      %2079 = dma.vmem_to_hbm [thread:$0]  %s2077, 128, %s8, [#allocation4]
    $region57: #{tpu_custom_call.1} parent=1 // pred_fallthru
      _
    // Predicated region
    $region58: #{tpu_custom_call.1} parent=1 // pred_check
      _
    $region59: #{tpu_custom_call.1} parent=1 // pred_check_branch
      %2081 = sbr.rel (0) target = $region61
    $region60: #{tpu_custom_call.1} parent=1 // pred_region
      %s2083 = ssub.s32 16, 16
      %2084 = vsyncadd [#allocation13], %s2083
      %s2086 = sshll.u32 [#allocation12], 4
      %s2087 = int_to_ptr.vmem [resolvable:$true] %s2086
      %2089 = dma.vmem_to_hbm [thread:$0]  %s2087, 16, %s9, [#allocation13]
    $region61: #{tpu_custom_call.1} parent=1 // pred_fallthru
      _
    // Predicated region
    $region62: #{tpu_custom_call.1} parent=1 // pred_check
      _
    $region63: #{tpu_custom_call.1} parent=1 // pred_check_branch
      %2091 = sbr.rel (0) target = $region65
    $region64: #{tpu_custom_call.1} parent=1 // pred_region
      %s2093 = ssub.s32 16, 16
      %2094 = vsyncadd [#allocation13], %s2093
      %s2096 = sshll.u32 [#allocation14], 4
      %s2097 = int_to_ptr.vmem [resolvable:$true] %s2096
      %2099 = dma.vmem_to_hbm [thread:$0]  %s2097, 16, %s10, [#allocation13]
    $region65: #{tpu_custom_call.1} parent=1 // pred_fallthru
      _
    // Predicated region
    $region66: #{tpu_custom_call.1} parent=1 // pred_check
      _
    $region67: #{tpu_custom_call.1} parent=1 // pred_check_branch
      %2101 = sbr.rel (0) target = $region69
    $region68: #{tpu_custom_call.1} parent=1 // pred_region
      %2102 = dma.done [#allocation4], 128
    $region69: #{tpu_custom_call.1} parent=1 // pred_fallthru
      _
    // Predicated region
    $region70: #{tpu_custom_call.1} parent=1 // pred_check
      _
    $region71: #{tpu_custom_call.1} parent=1 // pred_check_branch
      %2104 = sbr.rel (0) target = $region73
    $region72: #{tpu_custom_call.1} parent=1 // pred_region
      %2105 = dma.done [#allocation13], 16
    $region73: #{tpu_custom_call.1} parent=1 // pred_fallthru
      _
    // Predicated region
    $region74: #{tpu_custom_call.1} parent=1 // pred_check
      _
    $region75: #{tpu_custom_call.1} parent=1 // pred_check_branch
      %2107 = sbr.rel (0) target = $region77
    $region76: #{tpu_custom_call.1} parent=1 // pred_region
      %2108 = dma.done [#allocation13], 16
    $region77: #{tpu_custom_call.1} parent=1 // pred_fallthru
      _
    %2109 = vsyncpa [#allocation3], 1
    %2110 = vsyncpa [#allocation6], 1
    %2111 = vsyncpa [#allocation9], 1
    %2112 = vsyncpa [#allocation4], 1
    %2113 = vsyncpa [#allocation13], 1

</llo_original>
